<compile_context>
chip_gen: v5e
topology: v5e:2x2
jax: 0.10.0
libtpu: 0.0.40
codegen_flags: <defaults>
</compile_context>

<pallas_src>
import functools

import jax
import jax.numpy as jnp
import numpy as np
from jax.experimental import pallas as pl
from jax.experimental.pallas import tpu as pltpu


def _se_inverted_block_kernel(
    x_ref,      # (C_in, BT*S)     activations, matmul dtype (bf16)
    w1_ref,     # (C_mid, C_in)    inverted_conv weight, BN1 scale folded, matmul dtype
    b1_ref,     # (C_mid, 1)       folded BN1 shift, f32
    wdw_ref,    # (C_mid, K*K)     depthwise taps, BN2 scale folded, f32
    b2_ref,     # (C_mid, 1)       folded BN2 shift, f32
    wr_ref,     # (C_mid, C_se)    SE reduce weight (in-major), f32
    br_ref,     # (1, C_se)        SE reduce bias, f32
    we_ref,     # (C_mid, C_se)    SE expand weight (out-major), f32
    be_ref,     # (C_mid, 1)       SE expand bias, f32
    wp_ref,     # (C_out, C_mid)   point_conv weight, BN3 scale folded, matmul dtype
    b3_ref,     # (C_out, 1)       folded BN3 shift, f32
    mask_ref,   # (K*K, BT*S)      combined vertical+horizontal edge masks, f32
    o_ref,      # (C_out, BT*S)    output, f32
    ybuf,       # scratch (C_mid, BT*S + 2*PADL), f32
    *,
    H, W, K, PADL, BT,
):
    f32 = jnp.float32
    S = H * W
    Stot = BT * S
    pad = K // 2
    C_mid = w1_ref.shape[0]
    mm_dtype = w1_ref.dtype

    # ---------- inverted_conv: 1x1 conv (BN scale pre-folded) + shift + ReLU6 --------
    # x already arrives in the matmul dtype (bf16): no in-kernel cast pass.
    y = jnp.dot(w1_ref[...], x_ref[...], preferred_element_type=f32)   # (C_mid, Stot)
    y = jnp.clip(y + b1_ref[...], 0.0, 6.0)

    # ---------- depth_conv: depthwise KxK (stride 1, 'same') + shift + ReLU6 ---------
    # Flat spatial layout with PADL spare lanes on either side.  All out-of-image tap
    # reads (vertical, horizontal, and cross-image now that BT images are packed
    # back-to-back) are zeroed by the precomputed per-tap masks; the borders are still
    # zeroed (cheap) so uninitialized VMEM can never leak NaN/Inf through mask*0.
    ybuf[:, :PADL] = jnp.zeros((C_mid, PADL), f32)
    ybuf[:, PADL + Stot:] = jnp.zeros((C_mid, PADL), f32)
    ybuf[:, PADL:PADL + Stot] = y

    wtaps = wdw_ref[...]                              # (C_mid, K*K)  hoisted single load
    masks = mask_ref[...]                             # (K*K, Stot)   hoisted single load

    center = pad * K + pad
    # Center tap: use `y` directly (no buffer re-read, no mask) and init the accumulator.
    acc = y * wtaps[:, center:center + 1]
    for dh in range(-pad, pad + 1):
        for dw in range(-pad, pad + 1):
            if dh == 0 and dw == 0:
                continue
            t = (dh + pad) * K + (dw + pad)
            start = PADL + dh * W + dw                # static offset
            tap = ybuf[:, start:start + Stot]         # ref slice: streams from VMEM
            tap = tap * masks[t:t + 1, :]             # zero out-of-image contributions
            acc = acc + tap * wtaps[:, t:t + 1]       # per-channel tap weight
    y = jnp.clip(acc + b2_ref[...], 0.0, 6.0)         # (C_mid, Stot) f32

    # ---------- se_layer + point_conv, per packed image -------------------------------
    # SE tensors are tiny: keep them on the VPU (broadcast-multiply + reductions).
    wrk = wr_ref[...]
    brk = br_ref[...]
    wek = we_ref[...]
    bek = be_ref[...]
    wpk = wp_ref[...]
    b3k = b3_ref[...]
    inv_s = 1.0 / S
    for b in range(BT):                                # static, small trip count
        seg = y[:, b * S:(b + 1) * S]                                  # (C_mid, S)
        ca = jnp.sum(seg, axis=1, keepdims=True) * inv_s               # (C_mid, 1)  GAP
        z = jnp.sum(wrk * ca, axis=0, keepdims=True) + brk             # (1, C_se)
        z = jnp.maximum(z, 0.0)
        a = jnp.sum(wek * z, axis=1, keepdims=True) + bek              # (C_mid, 1)
        a = jnp.clip(a + 3.0, 0.0, 6.0) * (1.0 / 6.0)                  # hardsigmoid
        seg = (seg * a).astype(mm_dtype)                               # SE scale
        # point_conv: 1x1 conv (BN scale pre-folded) + shift, no activation.
        out = jnp.dot(wpk, seg, preferred_element_type=f32)            # (C_out, S)
        o_ref[:, b * S:(b + 1) * S] = (out + b3k).astype(o_ref.dtype)  # lane-dense store


def _pick_batch_tile(n, requested=None, max_tile=8):
    """Largest divisor of n (<= max_tile) that leaves >= 2 grid steps when n >= 2."""
    if requested is not None:
        if n % requested != 0:
            raise ValueError(f"batch_tile {requested} must divide batch {n}")
        return requested
    best = 1
    for bt in range(1, min(n, max_tile) + 1):
        if n % bt == 0 and (n // bt >= 2 or n == 1):
            best = bt
    return best


def _padded_bytes(shape, dtype):
    """VMEM footprint of an array including (sublane, 128)-tile padding."""
    itemsize = int(np.dtype(dtype).itemsize)
    sublane = {4: 8, 2: 16, 1: 32}.get(itemsize, 8)
    dims = (1, 1) + tuple(int(d) for d in shape)
    lead = int(np.prod(dims[:-2]))
    rows = -(-dims[-2] // sublane) * sublane
    cols = -(-dims[-1] // 128) * 128
    return lead * rows * cols * itemsize


def se_inverted_block(x_nchw, p, *, kernel_size=3, stride=1,
                      matmul_dtype=jnp.bfloat16, batch_tile=None):
    """x_nchw: (N, C_in, H, W) float32.  Returns (N, C_out, H, W) float32."""
    if stride != 1:
        # TODO(synk): stride > 1 not supported by the flat-spatial depthwise path.
        raise NotImplementedError("stride > 1 is not implemented in this kernel")

    N, C_in, H, W = x_nchw.shape
    K = kernel_size
    pad = K // 2
    S = H * W
    if S % 128 != 0:
        # TODO(synk): pad the flat spatial axis to a lane multiple for general H*W.
        raise NotImplementedError("H*W must be a multiple of 128 in this kernel")
    C_mid = p["w1"].shape[0]
    C_se = p["wr"].shape[0]
    C_out = p["wp"].shape[0]

    Bt = _pick_batch_tile(N, batch_tile)
    Stot = Bt * S
    PADL = max(128, ((pad * (W + 1) + 127) // 128) * 128)
    f32 = jnp.float32

    # -------------- parameter glue: fold BN scales into conv weights -----------------
    w1f = (p["w1"] * p["s1"][:, None]).astype(matmul_dtype)            # (C_mid, C_in)
    b1c = p["b1"][:, None].astype(f32)                                 # (C_mid, 1)
    wdwf = (p["wdw"].reshape(C_mid, K * K) * p["s2"][:, None]).astype(f32)  # (C_mid, K*K)
    b2c = p["b2"][:, None].astype(f32)                                 # (C_mid, 1)
    wrk = jnp.transpose(p["wr"]).astype(f32)                           # (C_mid, C_se)
    brk = p["br"][None, :].astype(f32)                                 # (1, C_se)
    wek = p["we"].astype(f32)                                          # (C_mid, C_se)
    bek = p["be"][:, None].astype(f32)                                 # (C_mid, 1)
    wpf = (p["wp"] * p["s3"][:, None]).astype(matmul_dtype)            # (C_out, C_mid)
    b3c = p["b3"][:, None].astype(f32)                                 # (C_out, 1)

    # Combined edge masks: mask[t, s] = 1 iff tap (dh,dw)=t lands inside the image for
    # flat position s (covers vertical + horizontal edges and cross-image packing).
    rr = np.arange(S) // W
    cc = np.arange(S) % W
    mask_np = np.zeros((K * K, S), np.float32)
    for dh in range(-pad, pad + 1):
        for dw in range(-pad, pad + 1):
            t = (dh + pad) * K + (dw + pad)
            mask_np[t] = ((rr + dh >= 0) & (rr + dh < H)
                          & (cc + dw >= 0) & (cc + dw < W)).astype(np.float32)
    masks = jnp.asarray(np.tile(mask_np, (1, Bt)))                     # (K*K, Bt*S)

    # Channel-major-across-batch layout, bf16 at the pallas_call boundary.
    x = jnp.transpose(x_nchw.reshape(N, C_in, S), (1, 0, 2))
    x = x.reshape(C_in, N * S).astype(matmul_dtype)

    weights = [w1f, b1c, wdwf, b2c, wrk, brk, wek, bek, wpf, b3c, masks]

    def _const_spec(arr):
        nd = arr.ndim
        # TODO(synk): single-buffer these constant-index blocks (pl.Buffered(1)) once
        # buffer_count=1 lowering is validated; here they total only a few KiB.
        return pl.BlockSpec(arr.shape, lambda g, nd=nd: (0,) * nd)

    # -------------- explicit VMEM budget (tile-padded), clamped for v7x --------------
    blk_in = _padded_bytes((C_in, Stot), matmul_dtype)
    blk_out = _padded_bytes((C_out, Stot), jnp.float32)
    wbytes = sum(_padded_bytes(w.shape, w.dtype) for w in weights)
    scratch_b = _padded_bytes((C_mid, Stot + 2 * PADL), jnp.float32)
    live_acts = 6 * _padded_bytes((C_mid, Stot), jnp.float32)          # in-flight f32 temps
    vmem_limit = int(2 * (blk_in + blk_out) + 2 * wbytes + scratch_b
                     + live_acts + (8 << 20))
    vmem_limit = min(vmem_limit, 64 << 20)                             # v7x physical VMEM

    # Advisory cost estimate for XLA's scheduler.
    flops_per_image = (2 * S * C_in * C_mid          # inverted conv
                       + 3 * K * K * C_mid * S       # depthwise taps (mul+add+mask)
                       + 2 * S * C_mid * C_out       # point conv
                       + 6 * C_mid * S               # ReLU6s, SE scale, shifts
                       + 4 * C_mid * C_se)           # SE FCs
    bytes_accessed = (int(np.prod(x.shape)) * np.dtype(matmul_dtype).itemsize
                      + C_out * N * S * 4
                      + sum(int(np.prod(w.shape)) * np.dtype(w.dtype).itemsize
                            for w in weights))
    cost = pl.CostEstimate(flops=int(N * flops_per_image), transcendentals=0,
                           bytes_accessed=int(bytes_accessed))

    kernel = functools.partial(_se_inverted_block_kernel,
                               H=H, W=W, K=K, PADL=PADL, BT=Bt)

    out = pl.pallas_call(
        kernel,
        out_shape=jax.ShapeDtypeStruct((C_out, N * S), jnp.float32),
        grid=(N // Bt,),
        in_specs=[pl.BlockSpec((C_in, Stot), lambda g: (0, g))]
                + [_const_spec(w) for w in weights],
        out_specs=pl.BlockSpec((C_out, Stot), lambda g: (0, g)),
        scratch_shapes=[pltpu.VMEM((C_mid, Stot + 2 * PADL), jnp.float32)],
        compiler_params=pltpu.CompilerParams(
            dimension_semantics=("parallel",),
            vmem_limit_bytes=vmem_limit,
        ),
        cost_estimate=cost,
    )(x, *weights)

    out = jnp.transpose(out.reshape(C_out, N, S), (1, 0, 2))
    return out.reshape(N, C_out, H, W)


# -------------------- deterministic parameter construction --------------------

def build_params(key, C_in, C_out, *, kernel_size=3, expand_ratio=6,
                 reduction=4, min_dim=16):
    """PyTorch-natural layouts: conv weights are (out, in) / (out, kh, kw)."""
    C_mid = int(round(C_in * expand_ratio))
    C_se = max(int(round(C_mid / reduction)), min_dim)
    K = kernel_size
    ks = jax.random.split(key, 10)

    def bn(k, c, eps=1e-5):
        k0, k1, k2, k3 = jax.random.split(k, 4)
        gamma = jax.random.uniform(k0, (c,), jnp.float32, 0.5, 1.5)
        beta = 0.1 * jax.random.normal(k1, (c,), jnp.float32)
        mean = 0.1 * jax.random.normal(k2, (c,), jnp.float32)
        var = jax.random.uniform(k3, (c,), jnp.float32, 0.5, 1.5)
        scale = gamma / jnp.sqrt(var + eps)
        shift = beta - mean * scale
        return scale, shift

    w1 = 0.5 * jax.random.normal(ks[0], (C_mid, C_in), jnp.float32)
    s1, b1 = bn(ks[1], C_mid)
    wdw = 0.5 * jax.random.normal(ks[2], (C_mid, K, K), jnp.float32)
    s2, b2 = bn(ks[3], C_mid)
    wr = 0.5 * jax.random.normal(ks[4], (C_se, C_mid), jnp.float32)
    br = 0.1 * jax.random.normal(ks[5], (C_se,), jnp.float32)
    we = 0.5 * jax.random.normal(ks[6], (C_mid, C_se), jnp.float32)
    be = 0.1 * jax.random.normal(ks[7], (C_mid,), jnp.float32)
    wp = 0.5 * jax.random.normal(ks[8], (C_out, C_mid), jnp.float32)
    s3, b3 = bn(ks[9], C_out)

    return dict(w1=w1, s1=s1, b1=b1, wdw=wdw, s2=s2, b2=b2,
                wr=wr, br=br, we=we, be=be, wp=wp, s3=s3, b3=b3)


# -------------------- pure-JAX reference (correctness check) --------------------

def reference(x_nchw, p, *, kernel_size=3, stride=1, matmul_dtype=jnp.bfloat16):
    """Eval-mode reference of the PyTorch module.  Mirrors the kernel's documented
    precision choice: bf16 operands / f32 accumulation at the two 1x1 convolutions
    (same folded weights); everything else in f32."""
    assert stride == 1
    f32 = jnp.float32
    x = x_nchw.astype(f32)
    N, C_in, H, W = x.shape
    K = kernel_size
    pad = K // 2
    C_mid = p["w1"].shape[0]

    # inverted_conv
    w1f = (p["w1"] * p["s1"][:, None]).astype(matmul_dtype)
    y = jnp.einsum("nchw,dc->ndhw", x.astype(matmul_dtype), w1f,
                   preferred_element_type=f32)
    y = jnp.clip(y + p["b1"][None, :, None, None], 0.0, 6.0)

    # depth_conv (stride 1, same padding)
    wdwf = p["wdw"].reshape(C_mid, K * K) * p["s2"][:, None]
    yp = jnp.pad(y, ((0, 0), (0, 0), (pad, pad), (pad, pad)))
    acc = jnp.zeros_like(y)
    for i in range(K):
        for j in range(K):
            acc = acc + yp[:, :, i:i + H, j:j + W] * wdwf[:, i * K + j][None, :, None, None]
    y = jnp.clip(acc + p["b2"][None, :, None, None], 0.0, 6.0)

    # se_layer
    ca = jnp.mean(y, axis=(2, 3))                                     # (N, C_mid)
    z = jnp.maximum(ca @ p["wr"].T + p["br"][None, :], 0.0)           # (N, C_se)
    a = z @ p["we"].T + p["be"][None, :]                              # (N, C_mid)
    a = jnp.clip(a / 6.0 + 0.5, 0.0, 1.0)                             # hardsigmoid
    y = y * a[:, :, None, None]

    # point_conv (no activation)
    wpf = (p["wp"] * p["s3"][:, None]).astype(matmul_dtype)
    out = jnp.einsum("nchw,dc->ndhw", y.astype(matmul_dtype), wpf,
                     preferred_element_type=f32)
    return out + p["b3"][None, :, None, None]


if __name__ == "__main__":
    key = jax.random.PRNGKey(0)
    k_x, k_p, k_x2 = jax.random.split(key, 3)

    C_in, C_out = 4, 8
    H = W = 16
    kernel_size, stride = 3, 1
    params = build_params(k_p, C_in, C_out, kernel_size=kernel_size)

    # Packed path: batch 4 -> batch_tile 2, two "parallel" grid steps of (C, 2*S) slabs.
    x = jax.random.normal(k_x, (4, C_in, H, W), jnp.float32)
    out = jax.block_until_ready(
        se_inverted_block(x, params, kernel_size=kernel_size, stride=stride))
    ref = jax.block_until_ready(
        reference(x, params, kernel_size=kernel_size, stride=stride))
    assert out.shape == (4, C_out, H, W), out.shape
    # 2e-2 tolerance: headroom for the documented bf16 MXU-operand precision at the
    # two 1x1 convolutions (f32 accumulation); everything else is f32.
    np.testing.assert_allclose(np.asarray(out), np.asarray(ref), rtol=2e-2, atol=2e-2)

    # Unpacked path (batch_tile == 1) exercises the same kernel with Bt = 1.
    x2 = jax.random.normal(k_x2, (2, C_in, H, W), jnp.float32)
    out2 = jax.block_until_ready(
        se_inverted_block(x2, params, kernel_size=kernel_size, stride=stride))
    ref2 = jax.block_until_ready(
        reference(x2, params, kernel_size=kernel_size, stride=stride))
    assert out2.shape == (2, C_out, H, W), out2.shape
    np.testing.assert_allclose(np.asarray(out2), np.asarray(ref2), rtol=2e-2, atol=2e-2)

    print("KERNEL_OK")
</pallas_src>

<mosaic_0001>
module attributes {stable_mosaic.version = 11 : i64} {
  func.func @_se_inverted_block_kernel(%arg0: i32, %arg1: memref<4x512xbf16, #tpu.memory_space<vmem>>, %arg2: memref<24x4xbf16, #tpu.memory_space<vmem>>, %arg3: memref<24x1xf32, #tpu.memory_space<vmem>>, %arg4: memref<24x9xf32, #tpu.memory_space<vmem>>, %arg5: memref<24x1xf32, #tpu.memory_space<vmem>>, %arg6: memref<24x16xf32, #tpu.memory_space<vmem>>, %arg7: memref<1x16xf32, #tpu.memory_space<vmem>>, %arg8: memref<24x16xf32, #tpu.memory_space<vmem>>, %arg9: memref<24x1xf32, #tpu.memory_space<vmem>>, %arg10: memref<8x24xbf16, #tpu.memory_space<vmem>>, %arg11: memref<8x1xf32, #tpu.memory_space<vmem>>, %arg12: memref<9x512xf32, #tpu.memory_space<vmem>>, %arg13: memref<8x512xf32, #tpu.memory_space<vmem>>, %arg14: memref<24x768xf32, #tpu.memory_space<vmem>>) attributes {dimension_semantics = [#tpu.dimension_semantics<parallel>], iteration_bounds = array<i64: 2>, scalar_prefetch = 0 : i64, scratch_operands = 1 : i64, tpu.core_type = #tpu.core_type<tc>, window_params = [{transform_indices = @transform_0, window_bounds = array<i64: 4, 512>}, {pipeline_mode = #tpu.pipeline_mode<synchronous>, transform_indices = @transform_1, window_bounds = array<i64: 24, 4>}, {pipeline_mode = #tpu.pipeline_mode<synchronous>, transform_indices = @transform_2, window_bounds = array<i64: 24, 1>}, {pipeline_mode = #tpu.pipeline_mode<synchronous>, transform_indices = @transform_3, window_bounds = array<i64: 24, 9>}, {pipeline_mode = #tpu.pipeline_mode<synchronous>, transform_indices = @transform_4, window_bounds = array<i64: 24, 1>}, {pipeline_mode = #tpu.pipeline_mode<synchronous>, transform_indices = @transform_5, window_bounds = array<i64: 24, 16>}, {pipeline_mode = #tpu.pipeline_mode<synchronous>, transform_indices = @transform_6, window_bounds = array<i64: 1, 16>}, {pipeline_mode = #tpu.pipeline_mode<synchronous>, transform_indices = @transform_7, window_bounds = array<i64: 24, 16>}, {pipeline_mode = #tpu.pipeline_mode<synchronous>, transform_indices = @transform_8, window_bounds = array<i64: 24, 1>}, {pipeline_mode = #tpu.pipeline_mode<synchronous>, transform_indices = @transform_9, window_bounds = array<i64: 8, 24>}, {pipeline_mode = #tpu.pipeline_mode<synchronous>, transform_indices = @transform_10, window_bounds = array<i64: 8, 1>}, {pipeline_mode = #tpu.pipeline_mode<synchronous>, transform_indices = @transform_11, window_bounds = array<i64: 9, 512>}, {transform_indices = @transform_12, window_bounds = array<i64: 8, 512>}]} {
    %c0 = arith.constant 0 : index
    %c0_0 = arith.constant 0 : index
    %0 = vector.load %arg2[%c0, %c0_0] : memref<24x4xbf16, #tpu.memory_space<vmem>>, vector<24x4xbf16>
    %c0_1 = arith.constant 0 : index
    %c0_2 = arith.constant 0 : index
    %1 = vector.load %arg1[%c0_1, %c0_2] : memref<4x512xbf16, #tpu.memory_space<vmem>>, vector<4x512xbf16>
    %cst = arith.constant dense<0.000000e+00> : vector<24x512xf32>
    %2 = tpu.matmul %0, %1, %cst {dimension_numbers = #tpu.dot_dimension_numbers<[1], [0], [0], [1], [0, 0, 1, 1], [], []>} : vector<24x4xbf16>, vector<4x512xbf16>, vector<24x512xf32> -> vector<24x512xf32>
    %c0_3 = arith.constant 0 : index
    %c0_4 = arith.constant 0 : index
    %3 = vector.load %arg3[%c0_3, %c0_4] : memref<24x1xf32, #tpu.memory_space<vmem>>, vector<24x1xf32>
    %4 = vector.broadcast %3 : vector<24x1xf32> to vector<24x512xf32>
    %5 = arith.addf %2, %4 : vector<24x512xf32>
    %cst_5 = arith.constant 0.000000e+00 : f32
    %cst_6 = arith.constant 6.000000e+00 : f32
    %6 = vector.broadcast %cst_5 : f32 to vector<24x512xf32>
    %7 = arith.maximumf %6, %5 : vector<24x512xf32>
    %8 = vector.broadcast %cst_6 : f32 to vector<24x512xf32>
    %9 = arith.minimumf %8, %7 : vector<24x512xf32>
    %cst_7 = arith.constant 0.000000e+00 : f32
    %10 = vector.broadcast %cst_7 : f32 to vector<24x128xf32>
    %c0_8 = arith.constant 0 : index
    %c0_9 = arith.constant 0 : index
    %11 = vector.load %arg14[%c0_8, %c0_9] : memref<24x768xf32, #tpu.memory_space<vmem>>, vector<24x128xf32>
    tpu.vector_store %arg14[%c0_8, %c0_9], %10 {strides = array<i32>} : memref<24x768xf32, #tpu.memory_space<vmem>>, vector<24x128xf32>,
    %cst_10 = arith.constant 0.000000e+00 : f32
    %12 = vector.broadcast %cst_10 : f32 to vector<24x128xf32>
    %c0_11 = arith.constant 0 : index
    %c640 = arith.constant 640 : index
    %13 = vector.load %arg14[%c0_11, %c640] : memref<24x768xf32, #tpu.memory_space<vmem>>, vector<24x128xf32>
    tpu.vector_store %arg14[%c0_11, %c640], %12 {strides = array<i32>} : memref<24x768xf32, #tpu.memory_space<vmem>>, vector<24x128xf32>,
    %c0_12 = arith.constant 0 : index
    %c128 = arith.constant 128 : index
    %14 = vector.load %arg14[%c0_12, %c128] : memref<24x768xf32, #tpu.memory_space<vmem>>, vector<24x512xf32>
    tpu.vector_store %arg14[%c0_12, %c128], %9 {strides = array<i32>} : memref<24x768xf32, #tpu.memory_space<vmem>>, vector<24x512xf32>,
    %c0_13 = arith.constant 0 : index
    %c0_14 = arith.constant 0 : index
    %15 = vector.load %arg4[%c0_13, %c0_14] : memref<24x9xf32, #tpu.memory_space<vmem>>, vector<24x9xf32>
    %c0_15 = arith.constant 0 : index
    %c0_16 = arith.constant 0 : index
    %16 = vector.load %arg12[%c0_15, %c0_16] : memref<9x512xf32, #tpu.memory_space<vmem>>, vector<9x512xf32>
    %17 = vector.extract_strided_slice %15 {offsets = [0, 4], sizes = [24, 1], strides = [1, 1]} : vector<24x9xf32> to vector<24x1xf32>
    %18 = vector.broadcast %17 : vector<24x1xf32> to vector<24x512xf32>
    %19 = arith.mulf %9, %18 : vector<24x512xf32>
    %c0_17 = arith.constant 0 : index
    %c111 = arith.constant 111 : index
    %20 = vector.load %arg14[%c0_17, %c111] : memref<24x768xf32, #tpu.memory_space<vmem>>, vector<24x512xf32>
    %21 = vector.extract_strided_slice %16 {offsets = [0, 0], sizes = [1, 512], strides = [1, 1]} : vector<9x512xf32> to vector<1x512xf32>
    %22 = vector.broadcast %21 : vector<1x512xf32> to vector<24x512xf32>
    %23 = arith.mulf %20, %22 : vector<24x512xf32>
    %24 = vector.extract_strided_slice %15 {offsets = [0, 0], sizes = [24, 1], strides = [1, 1]} : vector<24x9xf32> to vector<24x1xf32>
    %25 = vector.broadcast %24 : vector<24x1xf32> to vector<24x512xf32>
    %26 = arith.mulf %23, %25 : vector<24x512xf32>
    %27 = arith.addf %19, %26 : vector<24x512xf32>
    %c0_18 = arith.constant 0 : index
    %c112 = arith.constant 112 : index
    %28 = vector.load %arg14[%c0_18, %c112] : memref<24x768xf32, #tpu.memory_space<vmem>>, vector<24x512xf32>
    %29 = vector.extract_strided_slice %16 {offsets = [1, 0], sizes = [1, 512], strides = [1, 1]} : vector<9x512xf32> to vector<1x512xf32>
    %30 = vector.broadcast %29 : vector<1x512xf32> to vector<24x512xf32>
    %31 = arith.mulf %28, %30 : vector<24x512xf32>
    %32 = vector.extract_strided_slice %15 {offsets = [0, 1], sizes = [24, 1], strides = [1, 1]} : vector<24x9xf32> to vector<24x1xf32>
    %33 = vector.broadcast %32 : vector<24x1xf32> to vector<24x512xf32>
    %34 = arith.mulf %31, %33 : vector<24x512xf32>
    %35 = arith.addf %27, %34 : vector<24x512xf32>
    %c0_19 = arith.constant 0 : index
    %c113 = arith.constant 113 : index
    %36 = vector.load %arg14[%c0_19, %c113] : memref<24x768xf32, #tpu.memory_space<vmem>>, vector<24x512xf32>
    %37 = vector.extract_strided_slice %16 {offsets = [2, 0], sizes = [1, 512], strides = [1, 1]} : vector<9x512xf32> to vector<1x512xf32>
    %38 = vector.broadcast %37 : vector<1x512xf32> to vector<24x512xf32>
    %39 = arith.mulf %36, %38 : vector<24x512xf32>
    %40 = vector.extract_strided_slice %15 {offsets = [0, 2], sizes = [24, 1], strides = [1, 1]} : vector<24x9xf32> to vector<24x1xf32>
    %41 = vector.broadcast %40 : vector<24x1xf32> to vector<24x512xf32>
    %42 = arith.mulf %39, %41 : vector<24x512xf32>
    %43 = arith.addf %35, %42 : vector<24x512xf32>
    %c0_20 = arith.constant 0 : index
    %c127 = arith.constant 127 : index
    %44 = vector.load %arg14[%c0_20, %c127] : memref<24x768xf32, #tpu.memory_space<vmem>>, vector<24x512xf32>
    %45 = vector.extract_strided_slice %16 {offsets = [3, 0], sizes = [1, 512], strides = [1, 1]} : vector<9x512xf32> to vector<1x512xf32>
    %46 = vector.broadcast %45 : vector<1x512xf32> to vector<24x512xf32>
    %47 = arith.mulf %44, %46 : vector<24x512xf32>
    %48 = vector.extract_strided_slice %15 {offsets = [0, 3], sizes = [24, 1], strides = [1, 1]} : vector<24x9xf32> to vector<24x1xf32>
    %49 = vector.broadcast %48 : vector<24x1xf32> to vector<24x512xf32>
    %50 = arith.mulf %47, %49 : vector<24x512xf32>
    %51 = arith.addf %43, %50 : vector<24x512xf32>
    %c0_21 = arith.constant 0 : index
    %c129 = arith.constant 129 : index
    %52 = vector.load %arg14[%c0_21, %c129] : memref<24x768xf32, #tpu.memory_space<vmem>>, vector<24x512xf32>
    %53 = vector.extract_strided_slice %16 {offsets = [5, 0], sizes = [1, 512], strides = [1, 1]} : vector<9x512xf32> to vector<1x512xf32>
    %54 = vector.broadcast %53 : vector<1x512xf32> to vector<24x512xf32>
    %55 = arith.mulf %52, %54 : vector<24x512xf32>
    %56 = vector.extract_strided_slice %15 {offsets = [0, 5], sizes = [24, 1], strides = [1, 1]} : vector<24x9xf32> to vector<24x1xf32>
    %57 = vector.broadcast %56 : vector<24x1xf32> to vector<24x512xf32>
    %58 = arith.mulf %55, %57 : vector<24x512xf32>
    %59 = arith.addf %51, %58 : vector<24x512xf32>
    %c0_22 = arith.constant 0 : index
    %c143 = arith.constant 143 : index
    %60 = vector.load %arg14[%c0_22, %c143] : memref<24x768xf32, #tpu.memory_space<vmem>>, vector<24x512xf32>
    %61 = vector.extract_strided_slice %16 {offsets = [6, 0], sizes = [1, 512], strides = [1, 1]} : vector<9x512xf32> to vector<1x512xf32>
    %62 = vector.broadcast %61 : vector<1x512xf32> to vector<24x512xf32>
    %63 = arith.mulf %60, %62 : vector<24x512xf32>
    %64 = vector.extract_strided_slice %15 {offsets = [0, 6], sizes = [24, 1], strides = [1, 1]} : vector<24x9xf32> to vector<24x1xf32>
    %65 = vector.broadcast %64 : vector<24x1xf32> to vector<24x512xf32>
    %66 = arith.mulf %63, %65 : vector<24x512xf32>
    %67 = arith.addf %59, %66 : vector<24x512xf32>
    %c0_23 = arith.constant 0 : index
    %c144 = arith.constant 144 : index
    %68 = vector.load %arg14[%c0_23, %c144] : memref<24x768xf32, #tpu.memory_space<vmem>>, vector<24x512xf32>
    %69 = vector.extract_strided_slice %16 {offsets = [7, 0], sizes = [1, 512], strides = [1, 1]} : vector<9x512xf32> to vector<1x512xf32>
    %70 = vector.broadcast %69 : vector<1x512xf32> to vector<24x512xf32>
    %71 = arith.mulf %68, %70 : vector<24x512xf32>
    %72 = vector.extract_strided_slice %15 {offsets = [0, 7], sizes = [24, 1], strides = [1, 1]} : vector<24x9xf32> to vector<24x1xf32>
    %73 = vector.broadcast %72 : vector<24x1xf32> to vector<24x512xf32>
    %74 = arith.mulf %71, %73 : vector<24x512xf32>
    %75 = arith.addf %67, %74 : vector<24x512xf32>
    %c0_24 = arith.constant 0 : index
    %c145 = arith.constant 145 : index
    %76 = vector.load %arg14[%c0_24, %c145] : memref<24x768xf32, #tpu.memory_space<vmem>>, vector<24x512xf32>
    %77 = vector.extract_strided_slice %16 {offsets = [8, 0], sizes = [1, 512], strides = [1, 1]} : vector<9x512xf32> to vector<1x512xf32>
    %78 = vector.broadcast %77 : vector<1x512xf32> to vector<24x512xf32>
    %79 = arith.mulf %76, %78 : vector<24x512xf32>
    %80 = vector.extract_strided_slice %15 {offsets = [0, 8], sizes = [24, 1], strides = [1, 1]} : vector<24x9xf32> to vector<24x1xf32>
    %81 = vector.broadcast %80 : vector<24x1xf32> to vector<24x512xf32>
    %82 = arith.mulf %79, %81 : vector<24x512xf32>
    %83 = arith.addf %75, %82 : vector<24x512xf32>
    %c0_25 = arith.constant 0 : index
    %c0_26 = arith.constant 0 : index
    %84 = vector.load %arg5[%c0_25, %c0_26] : memref<24x1xf32, #tpu.memory_space<vmem>>, vector<24x1xf32>
    %85 = vector.broadcast %84 : vector<24x1xf32> to vector<24x512xf32>
    %86 = arith.addf %83, %85 : vector<24x512xf32>
    %cst_27 = arith.constant 0.000000e+00 : f32
    %cst_28 = arith.constant 6.000000e+00 : f32
    %87 = vector.broadcast %cst_27 : f32 to vector<24x512xf32>
    %88 = arith.maximumf %87, %86 : vector<24x512xf32>
    %89 = vector.broadcast %cst_28 : f32 to vector<24x512xf32>
    %90 = arith.minimumf %89, %88 : vector<24x512xf32>
    %c0_29 = arith.constant 0 : index
    %c0_30 = arith.constant 0 : index
    %91 = vector.load %arg6[%c0_29, %c0_30] : memref<24x16xf32, #tpu.memory_space<vmem>>, vector<24x16xf32>
    %c0_31 = arith.constant 0 : index
    %c0_32 = arith.constant 0 : index
    %92 = vector.load %arg7[%c0_31, %c0_32] : memref<1x16xf32, #tpu.memory_space<vmem>>, vector<1x16xf32>
    %c0_33 = arith.constant 0 : index
    %c0_34 = arith.constant 0 : index
    %93 = vector.load %arg8[%c0_33, %c0_34] : memref<24x16xf32, #tpu.memory_space<vmem>>, vector<24x16xf32>
    %c0_35 = arith.constant 0 : index
    %c0_36 = arith.constant 0 : index
    %94 = vector.load %arg9[%c0_35, %c0_36] : memref<24x1xf32, #tpu.memory_space<vmem>>, vector<24x1xf32>
    %c0_37 = arith.constant 0 : index
    %c0_38 = arith.constant 0 : index
    %95 = vector.load %arg10[%c0_37, %c0_38] : memref<8x24xbf16, #tpu.memory_space<vmem>>, vector<8x24xbf16>
    %c0_39 = arith.constant 0 : index
    %c0_40 = arith.constant 0 : index
    %96 = vector.load %arg11[%c0_39, %c0_40] : memref<8x1xf32, #tpu.memory_space<vmem>>, vector<8x1xf32>
    %97 = vector.extract_strided_slice %90 {offsets = [0, 0], sizes = [24, 256], strides = [1, 1]} : vector<24x512xf32> to vector<24x256xf32>
    %cst_41 = arith.constant dense<0.000000e+00> : vector<24xf32>
    %98 = vector.multi_reduction <add>, %97, %cst_41 [1] : vector<24x256xf32> to vector<24xf32>
    %99 = vector.shape_cast %98 : vector<24xf32> to vector<24x1xf32>
    %cst_42 = arith.constant 3.906250e-03 : f32
    %100 = vector.broadcast %cst_42 : f32 to vector<24x1xf32>
    %101 = arith.mulf %99, %100 : vector<24x1xf32>
    %102 = vector.broadcast %101 : vector<24x1xf32> to vector<24x16xf32>
    %103 = arith.mulf %91, %102 : vector<24x16xf32>
    %cst_43 = arith.constant dense<0.000000e+00> : vector<16xf32>
    %104 = vector.multi_reduction <add>, %103, %cst_43 [0] : vector<24x16xf32> to vector<16xf32>
    %105 = vector.shape_cast %104 : vector<16xf32> to vector<1x16xf32>
    %106 = arith.addf %105, %92 : vector<1x16xf32>
    %cst_44 = arith.constant 0.000000e+00 : f32
    %107 = vector.broadcast %cst_44 : f32 to vector<1x16xf32>
    %108 = arith.maximumf %106, %107 : vector<1x16xf32>
    %109 = vector.broadcast %108 : vector<1x16xf32> to vector<24x16xf32>
    %110 = arith.mulf %93, %109 : vector<24x16xf32>
    %cst_45 = arith.constant dense<0.000000e+00> : vector<24xf32>
    %111 = vector.multi_reduction <add>, %110, %cst_45 [1] : vector<24x16xf32> to vector<24xf32>
    %112 = vector.shape_cast %111 : vector<24xf32> to vector<24x1xf32>
    %113 = arith.addf %112, %94 : vector<24x1xf32>
    %cst_46 = arith.constant 3.000000e+00 : f32
    %114 = vector.broadcast %cst_46 : f32 to vector<24x1xf32>
    %115 = arith.addf %113, %114 : vector<24x1xf32>
    %cst_47 = arith.constant 0.000000e+00 : f32
    %cst_48 = arith.constant 6.000000e+00 : f32
    %116 = vector.broadcast %cst_47 : f32 to vector<24x1xf32>
    %117 = arith.maximumf %116, %115 : vector<24x1xf32>
    %118 = vector.broadcast %cst_48 : f32 to vector<24x1xf32>
    %119 = arith.minimumf %118, %117 : vector<24x1xf32>
    %cst_49 = arith.constant 0.166666672 : f32
    %120 = vector.broadcast %cst_49 : f32 to vector<24x1xf32>
    %121 = arith.mulf %119, %120 : vector<24x1xf32>
    %122 = vector.broadcast %121 : vector<24x1xf32> to vector<24x256xf32>
    %123 = arith.mulf %97, %122 : vector<24x256xf32>
    %124 = arith.truncf %123 : vector<24x256xf32> to vector<24x256xbf16>
    %cst_50 = arith.constant dense<0.000000e+00> : vector<8x256xf32>
    %125 = tpu.matmul %95, %124, %cst_50 {dimension_numbers = #tpu.dot_dimension_numbers<[1], [0], [0], [1], [0, 0, 1, 1], [], []>} : vector<8x24xbf16>, vector<24x256xbf16>, vector<8x256xf32> -> vector<8x256xf32>
    %126 = vector.broadcast %96 : vector<8x1xf32> to vector<8x256xf32>
    %127 = arith.addf %125, %126 : vector<8x256xf32>
    %c0_51 = arith.constant 0 : index
    %c0_52 = arith.constant 0 : index
    %128 = vector.load %arg13[%c0_51, %c0_52] : memref<8x512xf32, #tpu.memory_space<vmem>>, vector<8x256xf32>
    tpu.vector_store %arg13[%c0_51, %c0_52], %127 {strides = array<i32>} : memref<8x512xf32, #tpu.memory_space<vmem>>, vector<8x256xf32>,
    %129 = vector.extract_strided_slice %90 {offsets = [0, 256], sizes = [24, 256], strides = [1, 1]} : vector<24x512xf32> to vector<24x256xf32>
    %cst_53 = arith.constant dense<0.000000e+00> : vector<24xf32>
    %130 = vector.multi_reduction <add>, %129, %cst_53 [1] : vector<24x256xf32> to vector<24xf32>
    %131 = vector.shape_cast %130 : vector<24xf32> to vector<24x1xf32>
    %cst_54 = arith.constant 3.906250e-03 : f32
    %132 = vector.broadcast %cst_54 : f32 to vector<24x1xf32>
    %133 = arith.mulf %131, %132 : vector<24x1xf32>
    %134 = vector.broadcast %133 : vector<24x1xf32> to vector<24x16xf32>
    %135 = arith.mulf %91, %134 : vector<24x16xf32>
    %cst_55 = arith.constant dense<0.000000e+00> : vector<16xf32>
    %136 = vector.multi_reduction <add>, %135, %cst_55 [0] : vector<24x16xf32> to vector<16xf32>
    %137 = vector.shape_cast %136 : vector<16xf32> to vector<1x16xf32>
    %138 = arith.addf %137, %92 : vector<1x16xf32>
    %cst_56 = arith.constant 0.000000e+00 : f32
    %139 = vector.broadcast %cst_56 : f32 to vector<1x16xf32>
    %140 = arith.maximumf %138, %139 : vector<1x16xf32>
    %141 = vector.broadcast %140 : vector<1x16xf32> to vector<24x16xf32>
    %142 = arith.mulf %93, %141 : vector<24x16xf32>
    %cst_57 = arith.constant dense<0.000000e+00> : vector<24xf32>
    %143 = vector.multi_reduction <add>, %142, %cst_57 [1] : vector<24x16xf32> to vector<24xf32>
    %144 = vector.shape_cast %143 : vector<24xf32> to vector<24x1xf32>
    %145 = arith.addf %144, %94 : vector<24x1xf32>
    %cst_58 = arith.constant 3.000000e+00 : f32
    %146 = vector.broadcast %cst_58 : f32 to vector<24x1xf32>
    %147 = arith.addf %145, %146 : vector<24x1xf32>
    %cst_59 = arith.constant 0.000000e+00 : f32
    %cst_60 = arith.constant 6.000000e+00 : f32
    %148 = vector.broadcast %cst_59 : f32 to vector<24x1xf32>
    %149 = arith.maximumf %148, %147 : vector<24x1xf32>
    %150 = vector.broadcast %cst_60 : f32 to vector<24x1xf32>
    %151 = arith.minimumf %150, %149 : vector<24x1xf32>
    %cst_61 = arith.constant 0.166666672 : f32
    %152 = vector.broadcast %cst_61 : f32 to vector<24x1xf32>
    %153 = arith.mulf %151, %152 : vector<24x1xf32>
    %154 = vector.broadcast %153 : vector<24x1xf32> to vector<24x256xf32>
    %155 = arith.mulf %129, %154 : vector<24x256xf32>
    %156 = arith.truncf %155 : vector<24x256xf32> to vector<24x256xbf16>
    %cst_62 = arith.constant dense<0.000000e+00> : vector<8x256xf32>
    %157 = tpu.matmul %95, %156, %cst_62 {dimension_numbers = #tpu.dot_dimension_numbers<[1], [0], [0], [1], [0, 0, 1, 1], [], []>} : vector<8x24xbf16>, vector<24x256xbf16>, vector<8x256xf32> -> vector<8x256xf32>
    %158 = vector.broadcast %96 : vector<8x1xf32> to vector<8x256xf32>
    %159 = arith.addf %157, %158 : vector<8x256xf32>
    %c0_63 = arith.constant 0 : index
    %c256 = arith.constant 256 : index
    %160 = vector.load %arg13[%c0_63, %c256] : memref<8x512xf32, #tpu.memory_space<vmem>>, vector<8x256xf32>
    tpu.vector_store %arg13[%c0_63, %c256], %159 {strides = array<i32>} : memref<8x512xf32, #tpu.memory_space<vmem>>, vector<8x256xf32>,
    return
  }
  func.func @transform_0(%arg0: i32) -> (i32, i32) {
    %c0_i32 = arith.constant 0 : i32
    %c0_i32_0 = arith.constant 0 : i32
    return %c0_i32, %arg0 : i32, i32
  }
  func.func @transform_1(%arg0: i32) -> (i32, i32) {
    %c0_i32 = arith.constant 0 : i32
    %c0_i32_0 = arith.constant 0 : i32
    %c0_i32_1 = arith.constant 0 : i32
    return %c0_i32, %c0_i32_0 : i32, i32
  }
  func.func @transform_2(%arg0: i32) -> (i32, i32) {
    %c0_i32 = arith.constant 0 : i32
    %c0_i32_0 = arith.constant 0 : i32
    %c0_i32_1 = arith.constant 0 : i32
    return %c0_i32, %c0_i32_0 : i32, i32
  }
  func.func @transform_3(%arg0: i32) -> (i32, i32) {
    %c0_i32 = arith.constant 0 : i32
    %c0_i32_0 = arith.constant 0 : i32
    %c0_i32_1 = arith.constant 0 : i32
    return %c0_i32, %c0_i32_0 : i32, i32
  }
  func.func @transform_4(%arg0: i32) -> (i32, i32) {
    %c0_i32 = arith.constant 0 : i32
    %c0_i32_0 = arith.constant 0 : i32
    %c0_i32_1 = arith.constant 0 : i32
    return %c0_i32, %c0_i32_0 : i32, i32
  }
  func.func @transform_5(%arg0: i32) -> (i32, i32) {
    %c0_i32 = arith.constant 0 : i32
    %c0_i32_0 = arith.constant 0 : i32
    %c0_i32_1 = arith.constant 0 : i32
    return %c0_i32, %c0_i32_0 : i32, i32
  }
  func.func @transform_6(%arg0: i32) -> (i32, i32) {
    %c0_i32 = arith.constant 0 : i32
    %c0_i32_0 = arith.constant 0 : i32
    %c0_i32_1 = arith.constant 0 : i32
    return %c0_i32, %c0_i32_0 : i32, i32
  }
  func.func @transform_7(%arg0: i32) -> (i32, i32) {
    %c0_i32 = arith.constant 0 : i32
    %c0_i32_0 = arith.constant 0 : i32
    %c0_i32_1 = arith.constant 0 : i32
    return %c0_i32, %c0_i32_0 : i32, i32
  }
  func.func @transform_8(%arg0: i32) -> (i32, i32) {
    %c0_i32 = arith.constant 0 : i32
    %c0_i32_0 = arith.constant 0 : i32
    %c0_i32_1 = arith.constant 0 : i32
    return %c0_i32, %c0_i32_0 : i32, i32
  }
  func.func @transform_9(%arg0: i32) -> (i32, i32) {
    %c0_i32 = arith.constant 0 : i32
    %c0_i32_0 = arith.constant 0 : i32
    %c0_i32_1 = arith.constant 0 : i32
    return %c0_i32, %c0_i32_0 : i32, i32
  }
  func.func @transform_10(%arg0: i32) -> (i32, i32) {
    %c0_i32 = arith.constant 0 : i32
    %c0_i32_0 = arith.constant 0 : i32
    %c0_i32_1 = arith.constant 0 : i32
    return %c0_i32, %c0_i32_0 : i32, i32
  }
  func.func @transform_11(%arg0: i32) -> (i32, i32) {
    %c0_i32 = arith.constant 0 : i32
    %c0_i32_0 = arith.constant 0 : i32
    %c0_i32_1 = arith.constant 0 : i32
    return %c0_i32, %c0_i32_0 : i32, i32
  }
  func.func @transform_12(%arg0: i32) -> (i32, i32) {
    %c0_i32 = arith.constant 0 : i32
    %c0_i32_0 = arith.constant 0 : i32
    return %c0_i32, %arg0 : i32, i32
  }
}

</mosaic_0001>

<llo_original>
// kernel: tpu_custom_call.1
$region0: #{tpu_custom_call.1}
  #allocation0 [shape = 'u32[]', space=smem, size = 0x4, offset = 0x4, fixed_abs, tag = 'smem constant byte address 0x4 - core index']
  #allocation1 [shape = 'u32[72,128]{1,0:T(1,128)}', space=vmem, size = 0x9000, scoped, tag = 'internal scratch']
  #allocation2 [shape = 'f32[24,768]{1,0:T(8,128)}', space=vmem, size = 0x12000, scoped, tag = 'scratch operand']
  %s0 = inlined_call_operand.vmem [shape: bf16[4,1024], index: 0, kind: input, shape index: {}]
  %s1 = inlined_call_operand.vmem [shape: bf16[24,4], index: 1, kind: input, shape index: {}]
  %s2 = inlined_call_operand.vmem [shape: f32[24,1], index: 2, kind: input, shape index: {}]
  %s3 = inlined_call_operand.vmem [shape: f32[24,9], index: 3, kind: input, shape index: {}]
  %s4 = inlined_call_operand.vmem [shape: f32[24,1], index: 4, kind: input, shape index: {}]
  %s5 = inlined_call_operand.vmem [shape: f32[24,16], index: 5, kind: input, shape index: {}]
  %s6 = inlined_call_operand.vmem [shape: f32[1,16], index: 6, kind: input, shape index: {}]
  %s7 = inlined_call_operand.vmem [shape: f32[24,16], index: 7, kind: input, shape index: {}]
  %s8 = inlined_call_operand.vmem [shape: f32[24,1], index: 8, kind: input, shape index: {}]
  %s9 = inlined_call_operand.vmem [shape: bf16[8,24], index: 9, kind: input, shape index: {}]
  %s10 = inlined_call_operand.vmem [shape: f32[8,1], index: 10, kind: input, shape index: {}]
  %s11 = inlined_call_operand.vmem [shape: f32[9,512], index: 11, kind: input, shape index: {}]
  %s12 = inlined_call_operand.hbm [shape: f32[8,1024], index: 12, kind: output, shape index: {}]
  %s13 = sld [smem:[#allocation0]]
  $region81: #{tpu_custom_call.1} parent=0
    _
  %s15 = ssub.s32 1, %s13
  %s16 = scalar_select 0, %s15, %s13
  $region1: #{tpu_custom_call.1} parent=0
    #allocation3 [shape = 'u8[32768]{0}', space=vmem, size = 0x8000, scoped, tag = 'output window, operand 0']
    #allocation4 [shape = 's32[2]{0}', space=sflag, size = 0x8, scoped, tag = 'scoped memory for tpu_custom_call.1']
    %17 = vsyncpa [#allocation4], 0
    %s18 = scalar_lea.sflag [#allocation4], 1
    %19 = vsyncpa %s18, 0
    loop: start=0, step=1, limit=4
    $region2: #{tpu_custom_call.1} parent=1 // loop_pre_header
      _
    $region3: #{tpu_custom_call.1} parent=1 // loop_header
      %s21 = sphi 0, %s25
      %p22 = scmp.ge.s32.totalorder %s21, 4
      %s31 = sphi 0, %s33
      %s34 = sphi 0, %s31
      %s35 = sphi 0, %s34
      %s51 = sphi 0, %s35
      %s55 = sphi 0, %s55
      %s57 = sphi 0, %s55
      %s58 = sphi 0, %s57
      %s72 = sphi 0, %s58
      %s76 = sphi 0, %s76
      %s78 = sphi 0, %s76
      %s79 = sphi 0, %s78
      %s93 = sphi 0, %s79
      %s97 = sphi 0, %s97
      %s99 = sphi 0, %s97
      %s100 = sphi 0, %s99
      %s114 = sphi 0, %s100
      %s118 = sphi 0, %s118
      %s120 = sphi 0, %s118
      %s121 = sphi 0, %s120
      %s135 = sphi 0, %s121
      %s139 = sphi 0, %s139
      %s141 = sphi 0, %s139
      %s142 = sphi 0, %s141
      %s156 = sphi 0, %s142
      %s160 = sphi 0, %s160
      %s162 = sphi 0, %s160
      %s163 = sphi 0, %s162
      %s177 = sphi 0, %s163
      %s181 = sphi 0, %s181
      %s183 = sphi 0, %s181
      %s184 = sphi 0, %s183
      %s198 = sphi 0, %s184
      %s202 = sphi 0, %s202
      %s204 = sphi 0, %s202
      %s205 = sphi 0, %s204
      %s219 = sphi 0, %s205
      %s223 = sphi 0, %s223
      %s225 = sphi 0, %s223
      %s226 = sphi 0, %s225
      %s240 = sphi 0, %s226
      %s244 = sphi 0, %s244
      %s246 = sphi 0, %s244
      %s247 = sphi 0, %s246
      %s261 = sphi 0, %s247
      %s265 = sphi 0, %s265
      %s267 = sphi 0, %s265
      %s268 = sphi 0, %s267
      %s282 = sphi 0, %s268
      %s288 = sphi 0, %s290
      %s291 = sphi 0, %s288
      %s292 = sphi 0, %s291
      %s308 = sphi 0, %s292
    $region4: #{tpu_custom_call.1} parent=1 // loop_header_branch
      %24 = sbr.rel (%p22) target = $region8
    $region5: #{tpu_custom_call.1} parent=1 // loop_body
      %s26 = ssub.s32 %s21, 1
      %s27 = ssub.s32 %s21, 2
      %s28 = sadd.s32 %s21, 1
      %s29 = ssub.s32 %s21, %s28
      %p30 = scmp.eq.s32.totalorder %s29, 0
      %s32 = sadd.s32 %s31, 1
      %s33 = scalar_select %p30, %s31, %s32
      %p36 = pneg %p30
      %p37 = scmp.eq.s32.totalorder %s21, 1
      %p38 = por %p36, %p37
      %p39 = scmp.ne.s32.totalorder %s31, %s34
      %p40 = scmp.eq.s32.totalorder %s21, 0
      %p41 = por %p39, %p40
      %p42 = scmp.ne.s32.totalorder %s31, %s34
      %p43 = scmp.eq.s32.totalorder %s26, 1
      %p44 = por %p42, %p43
      %p45 = scmp.ne.s32.totalorder %s34, %s35
      %p46 = scmp.eq.s32.totalorder %s26, 0
      %p47 = por %p45, %p46
      %p48 = scmp.ne.s32.totalorder %s34, %s35
      %p49 = scmp.eq.s32.totalorder %s27, 1
      %p50 = por %p48, %p49
      %p52 = scmp.ne.s32.totalorder %s35, %s51
      %p53 = scmp.eq.s32.totalorder %s27, 0
      %p54 = por %p52, %p53
      %s56 = sadd.s32 %s55, 1
      %p59 = scmp.eq.s32.totalorder %s21, 1
      %p60 = scmp.ne.s32.totalorder %s55, %s57
      %p61 = scmp.eq.s32.totalorder %s21, 0
      %p62 = por %p60, %p61
      %p63 = scmp.ne.s32.totalorder %s55, %s57
      %p64 = scmp.eq.s32.totalorder %s26, 1
      %p65 = por %p63, %p64
      %p66 = scmp.ne.s32.totalorder %s57, %s58
      %p67 = scmp.eq.s32.totalorder %s26, 0
      %p68 = por %p66, %p67
      %p69 = scmp.ne.s32.totalorder %s57, %s58
      %p70 = scmp.eq.s32.totalorder %s27, 1
      %p71 = por %p69, %p70
      %p73 = scmp.ne.s32.totalorder %s58, %s72
      %p74 = scmp.eq.s32.totalorder %s27, 0
      %p75 = por %p73, %p74
      %s77 = sadd.s32 %s76, 1
      %p80 = scmp.eq.s32.totalorder %s21, 1
      %p81 = scmp.ne.s32.totalorder %s76, %s78
      %p82 = scmp.eq.s32.totalorder %s21, 0
      %p83 = por %p81, %p82
      %p84 = scmp.ne.s32.totalorder %s76, %s78
      %p85 = scmp.eq.s32.totalorder %s26, 1
      %p86 = por %p84, %p85
      %p87 = scmp.ne.s32.totalorder %s78, %s79
      %p88 = scmp.eq.s32.totalorder %s26, 0
      %p89 = por %p87, %p88
      %p90 = scmp.ne.s32.totalorder %s78, %s79
      %p91 = scmp.eq.s32.totalorder %s27, 1
      %p92 = por %p90, %p91
      %p94 = scmp.ne.s32.totalorder %s79, %s93
      %p95 = scmp.eq.s32.totalorder %s27, 0
      %p96 = por %p94, %p95
      %s98 = sadd.s32 %s97, 1
      %p101 = scmp.eq.s32.totalorder %s21, 1
      %p102 = scmp.ne.s32.totalorder %s97, %s99
      %p103 = scmp.eq.s32.totalorder %s21, 0
      %p104 = por %p102, %p103
      %p105 = scmp.ne.s32.totalorder %s97, %s99
      %p106 = scmp.eq.s32.totalorder %s26, 1
      %p107 = por %p105, %p106
      %p108 = scmp.ne.s32.totalorder %s99, %s100
      %p109 = scmp.eq.s32.totalorder %s26, 0
      %p110 = por %p108, %p109
      %p111 = scmp.ne.s32.totalorder %s99, %s100
      %p112 = scmp.eq.s32.totalorder %s27, 1
      %p113 = por %p111, %p112
      %p115 = scmp.ne.s32.totalorder %s100, %s114
      %p116 = scmp.eq.s32.totalorder %s27, 0
      %p117 = por %p115, %p116
      %s119 = sadd.s32 %s118, 1
      %p122 = scmp.eq.s32.totalorder %s21, 1
      %p123 = scmp.ne.s32.totalorder %s118, %s120
      %p124 = scmp.eq.s32.totalorder %s21, 0
      %p125 = por %p123, %p124
      %p126 = scmp.ne.s32.totalorder %s118, %s120
      %p127 = scmp.eq.s32.totalorder %s26, 1
      %p128 = por %p126, %p127
      %p129 = scmp.ne.s32.totalorder %s120, %s121
      %p130 = scmp.eq.s32.totalorder %s26, 0
      %p131 = por %p129, %p130
      %p132 = scmp.ne.s32.totalorder %s120, %s121
      %p133 = scmp.eq.s32.totalorder %s27, 1
      %p134 = por %p132, %p133
      %p136 = scmp.ne.s32.totalorder %s121, %s135
      %p137 = scmp.eq.s32.totalorder %s27, 0
      %p138 = por %p136, %p137
      %s140 = sadd.s32 %s139, 1
      %p143 = scmp.eq.s32.totalorder %s21, 1
      %p144 = scmp.ne.s32.totalorder %s139, %s141
      %p145 = scmp.eq.s32.totalorder %s21, 0
      %p146 = por %p144, %p145
      %p147 = scmp.ne.s32.totalorder %s139, %s141
      %p148 = scmp.eq.s32.totalorder %s26, 1
      %p149 = por %p147, %p148
      %p150 = scmp.ne.s32.totalorder %s141, %s142
      %p151 = scmp.eq.s32.totalorder %s26, 0
      %p152 = por %p150, %p151
      %p153 = scmp.ne.s32.totalorder %s141, %s142
      %p154 = scmp.eq.s32.totalorder %s27, 1
      %p155 = por %p153, %p154
      %p157 = scmp.ne.s32.totalorder %s142, %s156
      %p158 = scmp.eq.s32.totalorder %s27, 0
      %p159 = por %p157, %p158
      %s161 = sadd.s32 %s160, 1
      %p164 = scmp.eq.s32.totalorder %s21, 1
      %p165 = scmp.ne.s32.totalorder %s160, %s162
      %p166 = scmp.eq.s32.totalorder %s21, 0
      %p167 = por %p165, %p166
      %p168 = scmp.ne.s32.totalorder %s160, %s162
      %p169 = scmp.eq.s32.totalorder %s26, 1
      %p170 = por %p168, %p169
      %p171 = scmp.ne.s32.totalorder %s162, %s163
      %p172 = scmp.eq.s32.totalorder %s26, 0
      %p173 = por %p171, %p172
      %p174 = scmp.ne.s32.totalorder %s162, %s163
      %p175 = scmp.eq.s32.totalorder %s27, 1
      %p176 = por %p174, %p175
      %p178 = scmp.ne.s32.totalorder %s163, %s177
      %p179 = scmp.eq.s32.totalorder %s27, 0
      %p180 = por %p178, %p179
      %s182 = sadd.s32 %s181, 1
      %p185 = scmp.eq.s32.totalorder %s21, 1
      %p186 = scmp.ne.s32.totalorder %s181, %s183
      %p187 = scmp.eq.s32.totalorder %s21, 0
      %p188 = por %p186, %p187
      %p189 = scmp.ne.s32.totalorder %s181, %s183
      %p190 = scmp.eq.s32.totalorder %s26, 1
      %p191 = por %p189, %p190
      %p192 = scmp.ne.s32.totalorder %s183, %s184
      %p193 = scmp.eq.s32.totalorder %s26, 0
      %p194 = por %p192, %p193
      %p195 = scmp.ne.s32.totalorder %s183, %s184
      %p196 = scmp.eq.s32.totalorder %s27, 1
      %p197 = por %p195, %p196
      %p199 = scmp.ne.s32.totalorder %s184, %s198
      %p200 = scmp.eq.s32.totalorder %s27, 0
      %p201 = por %p199, %p200
      %s203 = sadd.s32 %s202, 1
      %p206 = scmp.eq.s32.totalorder %s21, 1
      %p207 = scmp.ne.s32.totalorder %s202, %s204
      %p208 = scmp.eq.s32.totalorder %s21, 0
      %p209 = por %p207, %p208
      %p210 = scmp.ne.s32.totalorder %s202, %s204
      %p211 = scmp.eq.s32.totalorder %s26, 1
      %p212 = por %p210, %p211
      %p213 = scmp.ne.s32.totalorder %s204, %s205
      %p214 = scmp.eq.s32.totalorder %s26, 0
      %p215 = por %p213, %p214
      %p216 = scmp.ne.s32.totalorder %s204, %s205
      %p217 = scmp.eq.s32.totalorder %s27, 1
      %p218 = por %p216, %p217
      %p220 = scmp.ne.s32.totalorder %s205, %s219
      %p221 = scmp.eq.s32.totalorder %s27, 0
      %p222 = por %p220, %p221
      %s224 = sadd.s32 %s223, 1
      %p227 = scmp.eq.s32.totalorder %s21, 1
      %p228 = scmp.ne.s32.totalorder %s223, %s225
      %p229 = scmp.eq.s32.totalorder %s21, 0
      %p230 = por %p228, %p229
      %p231 = scmp.ne.s32.totalorder %s223, %s225
      %p232 = scmp.eq.s32.totalorder %s26, 1
      %p233 = por %p231, %p232
      %p234 = scmp.ne.s32.totalorder %s225, %s226
      %p235 = scmp.eq.s32.totalorder %s26, 0
      %p236 = por %p234, %p235
      %p237 = scmp.ne.s32.totalorder %s225, %s226
      %p238 = scmp.eq.s32.totalorder %s27, 1
      %p239 = por %p237, %p238
      %p241 = scmp.ne.s32.totalorder %s226, %s240
      %p242 = scmp.eq.s32.totalorder %s27, 0
      %p243 = por %p241, %p242
      %s245 = sadd.s32 %s244, 1
      %p248 = scmp.eq.s32.totalorder %s21, 1
      %p249 = scmp.ne.s32.totalorder %s244, %s246
      %p250 = scmp.eq.s32.totalorder %s21, 0
      %p251 = por %p249, %p250
      %p252 = scmp.ne.s32.totalorder %s244, %s246
      %p253 = scmp.eq.s32.totalorder %s26, 1
      %p254 = por %p252, %p253
      %p255 = scmp.ne.s32.totalorder %s246, %s247
      %p256 = scmp.eq.s32.totalorder %s26, 0
      %p257 = por %p255, %p256
      %p258 = scmp.ne.s32.totalorder %s246, %s247
      %p259 = scmp.eq.s32.totalorder %s27, 1
      %p260 = por %p258, %p259
      %p262 = scmp.ne.s32.totalorder %s247, %s261
      %p263 = scmp.eq.s32.totalorder %s27, 0
      %p264 = por %p262, %p263
      %s266 = sadd.s32 %s265, 1
      %p269 = scmp.eq.s32.totalorder %s21, 1
      %p270 = scmp.ne.s32.totalorder %s265, %s267
      %p271 = scmp.eq.s32.totalorder %s21, 0
      %p272 = por %p270, %p271
      %p273 = scmp.ne.s32.totalorder %s265, %s267
      %p274 = scmp.eq.s32.totalorder %s26, 1
      %p275 = por %p273, %p274
      %p276 = scmp.ne.s32.totalorder %s267, %s268
      %p277 = scmp.eq.s32.totalorder %s26, 0
      %p278 = por %p276, %p277
      %p279 = scmp.ne.s32.totalorder %s267, %s268
      %p280 = scmp.eq.s32.totalorder %s27, 1
      %p281 = por %p279, %p280
      %p283 = scmp.ne.s32.totalorder %s268, %s282
      %p284 = scmp.eq.s32.totalorder %s27, 0
      %p285 = por %p283, %p284
      %s286 = ssub.s32 %s21, %s28
      %p287 = scmp.eq.s32.totalorder %s286, 0
      %s289 = sadd.s32 %s288, 1
      %s290 = scalar_select %p287, %s288, %s289
      %p293 = pneg %p287
      %p294 = scmp.eq.s32.totalorder %s21, 1
      %p295 = por %p293, %p294
      %p296 = scmp.ne.s32.totalorder %s288, %s291
      %p297 = scmp.eq.s32.totalorder %s21, 0
      %p298 = por %p296, %p297
      %p299 = scmp.ne.s32.totalorder %s288, %s291
      %p300 = scmp.eq.s32.totalorder %s26, 1
      %p301 = por %p299, %p300
      %p302 = scmp.ne.s32.totalorder %s291, %s292
      %p303 = scmp.eq.s32.totalorder %s26, 0
      %p304 = por %p302, %p303
      %p305 = scmp.ne.s32.totalorder %s291, %s292
      %p306 = scmp.eq.s32.totalorder %s27, 1
      %p307 = por %p305, %p306
      %p309 = scmp.ne.s32.totalorder %s292, %s308
      %p310 = scmp.eq.s32.totalorder %s27, 0
      %p311 = por %p309, %p310
      %p312 = scmp.le.s32.totalorder 1, %s21
      %p313 = scmp.lt.s32.totalorder %s21, 3
      %p314 = pnand %p312, %p313
      %p315 = pneg %p314
      // Predicated region
      $region9: #{tpu_custom_call.1} parent=5 // pred_check
        _
      $region10: #{tpu_custom_call.1} parent=5 // pred_check_branch
        %317 = sbr.rel (%p314) target = $region12
      $region11: #{tpu_custom_call.1} parent=5 // pred_region
        %s318 = ssub.s32 %s21, 1
        // Predicated region
        $region13: #{tpu_custom_call.1} parent=11 // pred_check
          %p319 = pneg %p68
        $region14: #{tpu_custom_call.1} parent=11 // pred_check_branch
          %321 = sbr.rel (%p319) target = $region16
        $region15: #{tpu_custom_call.1} parent=11 // pred_region
          _
        $region16: #{tpu_custom_call.1} parent=11 // pred_fallthru
          _
        // Predicated region
        $region17: #{tpu_custom_call.1} parent=11 // pred_check
          %p322 = pneg %p89
        $region18: #{tpu_custom_call.1} parent=11 // pred_check_branch
          %324 = sbr.rel (%p322) target = $region20
        $region19: #{tpu_custom_call.1} parent=11 // pred_region
          _
        $region20: #{tpu_custom_call.1} parent=11 // pred_fallthru
          _
        // Predicated region
        $region21: #{tpu_custom_call.1} parent=11 // pred_check
          %p325 = pneg %p110
        $region22: #{tpu_custom_call.1} parent=11 // pred_check_branch
          %327 = sbr.rel (%p325) target = $region24
        $region23: #{tpu_custom_call.1} parent=11 // pred_region
          _
        $region24: #{tpu_custom_call.1} parent=11 // pred_fallthru
          _
        // Predicated region
        $region25: #{tpu_custom_call.1} parent=11 // pred_check
          %p328 = pneg %p131
        $region26: #{tpu_custom_call.1} parent=11 // pred_check_branch
          %330 = sbr.rel (%p328) target = $region28
        $region27: #{tpu_custom_call.1} parent=11 // pred_region
          _
        $region28: #{tpu_custom_call.1} parent=11 // pred_fallthru
          _
        // Predicated region
        $region29: #{tpu_custom_call.1} parent=11 // pred_check
          %p331 = pneg %p152
        $region30: #{tpu_custom_call.1} parent=11 // pred_check_branch
          %333 = sbr.rel (%p331) target = $region32
        $region31: #{tpu_custom_call.1} parent=11 // pred_region
          _
        $region32: #{tpu_custom_call.1} parent=11 // pred_fallthru
          _
        // Predicated region
        $region33: #{tpu_custom_call.1} parent=11 // pred_check
          %p334 = pneg %p173
        $region34: #{tpu_custom_call.1} parent=11 // pred_check_branch
          %336 = sbr.rel (%p334) target = $region36
        $region35: #{tpu_custom_call.1} parent=11 // pred_region
          _
        $region36: #{tpu_custom_call.1} parent=11 // pred_fallthru
          _
        // Predicated region
        $region37: #{tpu_custom_call.1} parent=11 // pred_check
          %p337 = pneg %p194
        $region38: #{tpu_custom_call.1} parent=11 // pred_check_branch
          %339 = sbr.rel (%p337) target = $region40
        $region39: #{tpu_custom_call.1} parent=11 // pred_region
          _
        $region40: #{tpu_custom_call.1} parent=11 // pred_fallthru
          _
        // Predicated region
        $region41: #{tpu_custom_call.1} parent=11 // pred_check
          %p340 = pneg %p215
        $region42: #{tpu_custom_call.1} parent=11 // pred_check_branch
          %342 = sbr.rel (%p340) target = $region44
        $region43: #{tpu_custom_call.1} parent=11 // pred_region
          _
        $region44: #{tpu_custom_call.1} parent=11 // pred_fallthru
          _
        // Predicated region
        $region45: #{tpu_custom_call.1} parent=11 // pred_check
          %p343 = pneg %p236
        $region46: #{tpu_custom_call.1} parent=11 // pred_check_branch
          %345 = sbr.rel (%p343) target = $region48
        $region47: #{tpu_custom_call.1} parent=11 // pred_region
          _
        $region48: #{tpu_custom_call.1} parent=11 // pred_fallthru
          _
        // Predicated region
        $region49: #{tpu_custom_call.1} parent=11 // pred_check
          %p346 = pneg %p257
        $region50: #{tpu_custom_call.1} parent=11 // pred_check_branch
          %348 = sbr.rel (%p346) target = $region52
        $region51: #{tpu_custom_call.1} parent=11 // pred_region
          _
        $region52: #{tpu_custom_call.1} parent=11 // pred_fallthru
          _
        // Predicated region
        $region53: #{tpu_custom_call.1} parent=11 // pred_check
          %p349 = pneg %p278
        $region54: #{tpu_custom_call.1} parent=11 // pred_check_branch
          %351 = sbr.rel (%p349) target = $region56
        $region55: #{tpu_custom_call.1} parent=11 // pred_region
          _
        $region56: #{tpu_custom_call.1} parent=11 // pred_fallthru
          _
      $region12: #{tpu_custom_call.1} parent=5 // pred_fallthru
        _
      %p352 = scmp.lt.s32.totalorder %s21, 2
      // Predicated region
      $region57: #{tpu_custom_call.1} parent=5 // pred_check
        %p353 = pneg %p352
      $region58: #{tpu_custom_call.1} parent=5 // pred_check_branch
        %355 = sbr.rel (%p353) target = $region60
      $region59: #{tpu_custom_call.1} parent=5 // pred_region
        // Predicated region
        $region61: #{tpu_custom_call.1} parent=59 // pred_check
          %p356 = pneg %p41
        $region62: #{tpu_custom_call.1} parent=59 // pred_check_branch
          %358 = sbr.rel (%p356) target = $region64
        $region63: #{tpu_custom_call.1} parent=59 // pred_region
          %s359 = smul.u32 4, %s21
          %p360 = scmp.lt.s32.totalorder %s359, 7
          %s361 = scalar_select %p360, %s359, 7
          %s362 = smul.addr %s361, 2
          %s363 = scalar_lea.vmem %s0, %s362
          %s364 = smul.u32 4, %s21
        $region64: #{tpu_custom_call.1} parent=59 // pred_fallthru
          _
      $region60: #{tpu_custom_call.1} parent=5 // pred_fallthru
        _
      %p365 = scmp.le.s32.totalorder 1, %s21
      %p366 = scmp.lt.s32.totalorder %s21, 3
      %p367 = pnand %p365, %p366
      %p368 = pneg %p367
      // Predicated region
      $region65: #{tpu_custom_call.1} parent=5 // pred_check
        _
      $region66: #{tpu_custom_call.1} parent=5 // pred_check_branch
        %370 = sbr.rel (%p367) target = $region68
      $region67: #{tpu_custom_call.1} parent=5 // pred_region
        %s371 = ssub.s32 %s21, 1
        %s372 = smul.u32 4, %s26
        %p373 = scmp.lt.s32.totalorder %s372, 7
        %s374 = scalar_select %p373, %s372, 7
        %s375 = smul.addr %s374, 2
        %s376 = scalar_lea.vmem %s0, %s375
        %p377 = pneg %p47
        %p378 = pneg %p44
        %p379 = pneg %p68
        %p380 = pneg %p65
        %p381 = pneg %p89
        %p382 = pneg %p86
        %p383 = pneg %p110
        %p384 = pneg %p107
        %p385 = pneg %p131
        %p386 = pneg %p128
        %p387 = pneg %p152
        %p388 = pneg %p149
        %p389 = pneg %p173
        %p390 = pneg %p170
        %p391 = pneg %p194
        %p392 = pneg %p191
        %p393 = pneg %p215
        %p394 = pneg %p212
        %p395 = pneg %p236
        %p396 = pneg %p233
        %p397 = pneg %p257
        %p398 = pneg %p254
        %p399 = pneg %p278
        %p400 = pneg %p275
        %p401 = pneg %p304
        %p402 = pneg %p301
        %s403 = sand.u32 %s291, 1
        %s404 = scalar_lea.sflag [#allocation4], %s403
        %s405 = sand.u32 %s291, 1
        %s406 = smul.addr %s405, 32
        %s407 = scalar_lea.vmem [#allocation3], %s406
        %s408 = smul.u32 4, %s26
        %p409 = scmp.lt.s32.totalorder %s408, 7
        %s410 = scalar_select %p409, %s408, 7
        %s411 = smul.addr %s410, 2
        %s412 = scalar_lea.vmem %s0, %s411
        %s413 = smul.u32 4, %s26
        %s414 = smul.u32 4, %s26
        %v416 = vld [vmem:[%s1] sm:$0xf]
        %v417 = vld [vmem:[%s1 + $0x4] sm:$0xf]
        %v418 = vld [vmem:[%s1 + $0x8] sm:$0xf]
        %v419 = vld [vmem:[%s412] sm:$0xff]
        %v420 = vld [vmem:[%s2] sm:$0xff]
        %v421 = vld [vmem:[%s2 + $0x8] sm:$0xff]
        %v422 = vld [vmem:[%s2 + $0x10] sm:$0xff]
        %424 = vset.pattern.permute.xlu0 0
        %425 = vperm.xlu0 %424, %v420
        %v426 = vpop.permute.xlu0 %425
        %429 = vset.pattern.permute.xlu0 0
        %430 = vperm.xlu0 %429, %v421
        %v431 = vpop.permute.xlu0 %430
        %434 = vset.pattern.permute.xlu0 0
        %435 = vperm.xlu0 %434, %v422
        %v436 = vpop.permute.xlu0 %435
        %v441 = vunpack.c.l.b16 %v416
        %v442 = vunpack.c.l.b16 %v417
        %v443 = vunpack.c.l.b16 %v418
        %v444 = vpack.c.b16 %v442, %v441
        %v445 = vpack.c.b16 %v443, %v443
        %447 = vst [vmem:[#allocation1] ss:$4 sm:$0xff] %v419
        %v448 = vld.sshfl [vmem:[#allocation1] sm:$0xff pattern:$0x73625140]
        %v449 = vld.sshfl [vmem:[#allocation1 + $0x8] sm:$0xff pattern:$0x73625140]
        %v450 = vld.sshfl [vmem:[#allocation1 + $0x10] sm:$0xff pattern:$0x73625140]
        %v451 = vld.sshfl [vmem:[#allocation1 + $0x18] sm:$0xff pattern:$0x73625140]
        %vm452 = vcmask 31744
        %v454 = vsel %vm452, %v444, 0
        %v457 = vsel %vm452, %v445, 0
        %vm459 = vcmask 1041408
        %v460 = vsel %vm459, %v448, 0
        %v462 = vsel %vm459, %v449, 0
        %v464 = vsel %vm459, %v450, 0
        %v466 = vsel %vm459, %v451, 0
        %468 = vmatpush.bf16.msra.mxu0 0
        %469 = vmatpush.bf16.msra.mxu0 0
        %470 = vmatpush.bf16.msra.mxu0 0
        %471 = vmatpush.bf16.msra.mxu0 0
        %472 = vmatpush.bf16.msra.mxu0 0
        %473 = vmatpush.bf16.msra.mxu0 0
        %474 = vmatpush.bf16.msra.mxu0 0
        %475 = vmatpush.bf16.msra.mxu0 %v460
        %476 = vmatmul.bf16.gmra.mxu0 %v454
        %v477 = vpop.f32.mrf.mxu0
        %v478 = vadd.f32 %v426, %v477
        %v479 = vpop.f32.mrf.mxu0
        %v480 = vadd.f32 %v431, %v479
        %481 = vmatmul.bf16.gmra.mxu0 %v457
        %v482 = vpop.f32.mrf.mxu0
        %v483 = vadd.f32 %v436, %v482
        %v484 = vpop.f32.mrf.mxu0
        %485 = vdwg.mxu0
        %486 = vmatpush.bf16.msra.mxu0 0
        %487 = vmatpush.bf16.msra.mxu0 0
        %488 = vmatpush.bf16.msra.mxu0 0
        %489 = vmatpush.bf16.msra.mxu0 0
        %490 = vmatpush.bf16.msra.mxu0 0
        %491 = vmatpush.bf16.msra.mxu0 0
        %492 = vmatpush.bf16.msra.mxu0 0
        %493 = vmatpush.bf16.msra.mxu0 %v462
        %494 = vmatmul.bf16.gmra.mxu0 %v454
        %v495 = vpop.f32.mrf.mxu0
        %v496 = vadd.f32 %v426, %v495
        %v497 = vpop.f32.mrf.mxu0
        %v498 = vadd.f32 %v431, %v497
        %499 = vmatmul.bf16.gmra.mxu0 %v457
        %v500 = vpop.f32.mrf.mxu0
        %v501 = vadd.f32 %v436, %v500
        %v502 = vpop.f32.mrf.mxu0
        %503 = vdwg.mxu0
        %504 = vmatpush.bf16.msra.mxu0 0
        %505 = vmatpush.bf16.msra.mxu0 0
        %506 = vmatpush.bf16.msra.mxu0 0
        %507 = vmatpush.bf16.msra.mxu0 0
        %508 = vmatpush.bf16.msra.mxu0 0
        %509 = vmatpush.bf16.msra.mxu0 0
        %510 = vmatpush.bf16.msra.mxu0 0
        %511 = vmatpush.bf16.msra.mxu0 %v464
        %512 = vmatmul.bf16.gmra.mxu0 %v454
        %v513 = vpop.f32.mrf.mxu0
        %v514 = vadd.f32 %v426, %v513
        %v515 = vpop.f32.mrf.mxu0
        %v516 = vadd.f32 %v431, %v515
        %517 = vmatmul.bf16.gmra.mxu0 %v457
        %v518 = vpop.f32.mrf.mxu0
        %v519 = vadd.f32 %v436, %v518
        %v520 = vpop.f32.mrf.mxu0
        %521 = vdwg.mxu0
        %522 = vmatpush.bf16.msra.mxu0 0
        %523 = vmatpush.bf16.msra.mxu0 0
        %524 = vmatpush.bf16.msra.mxu0 0
        %525 = vmatpush.bf16.msra.mxu0 0
        %526 = vmatpush.bf16.msra.mxu0 0
        %527 = vmatpush.bf16.msra.mxu0 0
        %528 = vmatpush.bf16.msra.mxu0 0
        %529 = vmatpush.bf16.msra.mxu0 %v466
        %530 = vmatmul.bf16.gmra.mxu0 %v454
        %v531 = vpop.f32.mrf.mxu0
        %v532 = vadd.f32 %v426, %v531
        %v533 = vpop.f32.mrf.mxu0
        %v534 = vadd.f32 %v431, %v533
        %535 = vmatmul.bf16.gmra.mxu0 %v457
        %v536 = vpop.f32.mrf.mxu0
        %v537 = vadd.f32 %v436, %v536
        %v538 = vpop.f32.mrf.mxu0
        %539 = vdwg.mxu0
        %v540 = vmax.f32 %v478, 0.0
        %v541 = vmax.f32 %v496, 0.0
        %v542 = vmax.f32 %v514, 0.0
        %v543 = vmax.f32 %v532, 0.0
        %v544 = vmax.f32 %v480, 0.0
        %v545 = vmax.f32 %v498, 0.0
        %v546 = vmax.f32 %v516, 0.0
        %v547 = vmax.f32 %v534, 0.0
        %v548 = vmax.f32 %v483, 0.0
        %v549 = vmax.f32 %v501, 0.0
        %v550 = vmax.f32 %v519, 0.0
        %v551 = vmax.f32 %v537, 0.0
        %v552 = vmin.f32 %v540, 6.0
        %v553 = vmin.f32 %v541, 6.0
        %v554 = vmin.f32 %v542, 6.0
        %v555 = vmin.f32 %v543, 6.0
        %v556 = vmin.f32 %v544, 6.0
        %v557 = vmin.f32 %v545, 6.0
        %v558 = vmin.f32 %v546, 6.0
        %v559 = vmin.f32 %v547, 6.0
        %v560 = vmin.f32 %v548, 6.0
        %v561 = vmin.f32 %v549, 6.0
        %v562 = vmin.f32 %v550, 6.0
        %v563 = vmin.f32 %v551, 6.0
        %564 = vst [vmem:[#allocation2] sm:$0xff] 0.0
        %565 = vst [vmem:[#allocation2 + $0x30] sm:$0xff] 0.0
        %566 = vst [vmem:[#allocation2 + $0x60] sm:$0xff] 0.0
        %567 = vst [vmem:[#allocation2 + $0x28] sm:$0xff] 0.0
        %568 = vst [vmem:[#allocation2 + $0x58] sm:$0xff] 0.0
        %569 = vst [vmem:[#allocation2 + $0x88] sm:$0xff] 0.0
        %570 = vst [vmem:[#allocation2 + $0x8] sm:$0xff] %v552
        %571 = vst [vmem:[#allocation2 + $0x10] sm:$0xff] %v553
        %572 = vst [vmem:[#allocation2 + $0x18] sm:$0xff] %v554
        %573 = vst [vmem:[#allocation2 + $0x20] sm:$0xff] %v555
        %574 = vst [vmem:[#allocation2 + $0x38] sm:$0xff] %v556
        %575 = vst [vmem:[#allocation2 + $0x40] sm:$0xff] %v557
        %576 = vst [vmem:[#allocation2 + $0x48] sm:$0xff] %v558
        %577 = vst [vmem:[#allocation2 + $0x50] sm:$0xff] %v559
        %578 = vst [vmem:[#allocation2 + $0x68] sm:$0xff] %v560
        %579 = vst [vmem:[#allocation2 + $0x70] sm:$0xff] %v561
        %580 = vst [vmem:[#allocation2 + $0x78] sm:$0xff] %v562
        %581 = vst [vmem:[#allocation2 + $0x80] sm:$0xff] %v563
        %v582 = vld [vmem:[%s3] sm:$0xff]
        %v583 = vld [vmem:[%s3 + $0x8] sm:$0xff]
        %v584 = vld [vmem:[%s3 + $0x10] sm:$0xff]
        %v585 = vld [vmem:[%s11] sm:$0xff]
        %v586 = vld [vmem:[%s11 + $0x8] sm:$0xff]
        %v587 = vld [vmem:[%s11 + $0x10] sm:$0xff]
        %v588 = vld [vmem:[%s11 + $0x18] sm:$0xff]
        %v589 = vld [vmem:[%s11 + $0x20] sm:$0x1]
        %v590 = vld [vmem:[%s11 + $0x28] sm:$0x1]
        %v591 = vld [vmem:[%s11 + $0x30] sm:$0x1]
        %v592 = vld [vmem:[%s11 + $0x38] sm:$0x1]
        %594 = vset.pattern.permute.xlu0 4
        %595 = vperm.xlu0 %594, %v582
        %v596 = vpop.permute.xlu0 %595
        %599 = vset.pattern.permute.xlu0 4
        %600 = vperm.xlu0 %599, %v583
        %v601 = vpop.permute.xlu0 %600
        %604 = vset.pattern.permute.xlu0 4
        %605 = vperm.xlu0 %604, %v584
        %v606 = vpop.permute.xlu0 %605
        %v608 = vmul.f32 %v552, %v596
        %v609 = vmul.f32 %v553, %v596
        %v610 = vmul.f32 %v554, %v596
        %v611 = vmul.f32 %v555, %v596
        %v612 = vmul.f32 %v556, %v601
        %v613 = vmul.f32 %v557, %v601
        %v614 = vmul.f32 %v558, %v601
        %v615 = vmul.f32 %v559, %v601
        %v616 = vmul.f32 %v560, %v606
        %v617 = vmul.f32 %v561, %v606
        %v618 = vmul.f32 %v562, %v606
        %v619 = vmul.f32 %v563, %v606
        %v620 = vld [vmem:[#allocation2] sm:$0xff]
        %v621 = vld [vmem:[#allocation2 + $0x8] sm:$0xff]
        %v622 = vld [vmem:[#allocation2 + $0x10] sm:$0xff]
        %v623 = vld [vmem:[#allocation2 + $0x18] sm:$0xff]
        %v624 = vld [vmem:[#allocation2 + $0x20] sm:$0xff]
        %v625 = vld [vmem:[#allocation2 + $0x30] sm:$0xff]
        %v626 = vld [vmem:[#allocation2 + $0x38] sm:$0xff]
        %v627 = vld [vmem:[#allocation2 + $0x40] sm:$0xff]
        %v628 = vld [vmem:[#allocation2 + $0x48] sm:$0xff]
        %v629 = vld [vmem:[#allocation2 + $0x50] sm:$0xff]
        %v630 = vld [vmem:[#allocation2 + $0x60] sm:$0xff]
        %v631 = vld [vmem:[#allocation2 + $0x68] sm:$0xff]
        %v632 = vld [vmem:[#allocation2 + $0x70] sm:$0xff]
        %v633 = vld [vmem:[#allocation2 + $0x78] sm:$0xff]
        %v634 = vld [vmem:[#allocation2 + $0x80] sm:$0xff]
        %v635 = vperm.slane %v585, 0
        %v636 = vperm.slane %v586, 0
        %v637 = vperm.slane %v587, 0
        %v638 = vperm.slane %v588, 0
        %643 = vrot.lane.b32.xlu0 %v635, 111
        %v644 = vpop.permute.xlu0 %643
        %645 = vrot.lane.b32.xlu0 %v636, 111
        %v646 = vpop.permute.xlu0 %645
        %647 = vrot.lane.b32.xlu0 %v637, 111
        %v648 = vpop.permute.xlu0 %647
        %649 = vrot.lane.b32.xlu0 %v638, 111
        %v650 = vpop.permute.xlu0 %649
        %vm651 = vcmask 908288
        %v652 = vsel %vm651, %v644, %v646
        %v653 = vsel %vm651, %v646, %v648
        %v654 = vsel %vm651, %v648, %v650
        %v660 = vmul.f32 %v620, %v644
        %v661 = vmul.f32 %v621, %v652
        %v662 = vmul.f32 %v622, %v653
        %v663 = vmul.f32 %v623, %v654
        %v664 = vmul.f32 %v624, %v650
        %v665 = vmul.f32 %v625, %v644
        %v666 = vmul.f32 %v626, %v652
        %v667 = vmul.f32 %v627, %v653
        %v668 = vmul.f32 %v628, %v654
        %v669 = vmul.f32 %v629, %v650
        %v670 = vmul.f32 %v630, %v644
        %v671 = vmul.f32 %v631, %v652
        %v672 = vmul.f32 %v632, %v653
        %v673 = vmul.f32 %v633, %v654
        %v674 = vmul.f32 %v634, %v650
        %675 = vset.pattern.permute.xlu0 0
        %676 = vperm.xlu0 %675, %v582
        %v677 = vpop.permute.xlu0 %676
        %679 = vset.pattern.permute.xlu0 0
        %680 = vperm.xlu0 %679, %v583
        %v681 = vpop.permute.xlu0 %680
        %683 = vset.pattern.permute.xlu0 0
        %684 = vperm.xlu0 %683, %v584
        %v685 = vpop.permute.xlu0 %684
        %v687 = vmul.f32 %v660, %v677
        %v688 = vmul.f32 %v661, %v677
        %v689 = vmul.f32 %v662, %v677
        %v690 = vmul.f32 %v663, %v677
        %v691 = vmul.f32 %v664, %v677
        %v692 = vmul.f32 %v665, %v681
        %v693 = vmul.f32 %v666, %v681
        %v694 = vmul.f32 %v667, %v681
        %v695 = vmul.f32 %v668, %v681
        %v696 = vmul.f32 %v669, %v681
        %v697 = vmul.f32 %v670, %v685
        %v698 = vmul.f32 %v671, %v685
        %v699 = vmul.f32 %v672, %v685
        %v700 = vmul.f32 %v673, %v685
        %v701 = vmul.f32 %v674, %v685
        %717 = vrot.lane.b32.xlu0 %v687, 17
        %v718 = vpop.permute.xlu0 %717
        %719 = vrot.lane.b32.xlu0 %v688, 17
        %v720 = vpop.permute.xlu0 %719
        %721 = vrot.lane.b32.xlu0 %v689, 17
        %v722 = vpop.permute.xlu0 %721
        %723 = vrot.lane.b32.xlu0 %v690, 17
        %v724 = vpop.permute.xlu0 %723
        %725 = vrot.lane.b32.xlu0 %v691, 17
        %v726 = vpop.permute.xlu0 %725
        %727 = vrot.lane.b32.xlu0 %v692, 17
        %v728 = vpop.permute.xlu0 %727
        %729 = vrot.lane.b32.xlu0 %v693, 17
        %v730 = vpop.permute.xlu0 %729
        %731 = vrot.lane.b32.xlu0 %v694, 17
        %v732 = vpop.permute.xlu0 %731
        %733 = vrot.lane.b32.xlu0 %v695, 17
        %v734 = vpop.permute.xlu0 %733
        %735 = vrot.lane.b32.xlu0 %v696, 17
        %v736 = vpop.permute.xlu0 %735
        %737 = vrot.lane.b32.xlu0 %v697, 17
        %v738 = vpop.permute.xlu0 %737
        %739 = vrot.lane.b32.xlu0 %v698, 17
        %v740 = vpop.permute.xlu0 %739
        %741 = vrot.lane.b32.xlu0 %v699, 17
        %v742 = vpop.permute.xlu0 %741
        %743 = vrot.lane.b32.xlu0 %v700, 17
        %v744 = vpop.permute.xlu0 %743
        %745 = vrot.lane.b32.xlu0 %v701, 17
        %v746 = vpop.permute.xlu0 %745
        %vm747 = vcmask 138240
        %v748 = vsel %vm747, %v718, %v720
        %v749 = vsel %vm747, %v720, %v722
        %v750 = vsel %vm747, %v722, %v724
        %v751 = vsel %vm747, %v724, %v726
        %v752 = vsel %vm747, %v728, %v730
        %v753 = vsel %vm747, %v730, %v732
        %v754 = vsel %vm747, %v732, %v734
        %v755 = vsel %vm747, %v734, %v736
        %v756 = vsel %vm747, %v738, %v740
        %v757 = vsel %vm747, %v740, %v742
        %v758 = vsel %vm747, %v742, %v744
        %v759 = vsel %vm747, %v744, %v746
        %v772 = vadd.f32 %v608, %v748
        %v773 = vadd.f32 %v609, %v749
        %v774 = vadd.f32 %v610, %v750
        %v775 = vadd.f32 %v611, %v751
        %v776 = vadd.f32 %v612, %v752
        %v777 = vadd.f32 %v613, %v753
        %v778 = vadd.f32 %v614, %v754
        %v779 = vadd.f32 %v615, %v755
        %v780 = vadd.f32 %v616, %v756
        %v781 = vadd.f32 %v617, %v757
        %v782 = vadd.f32 %v618, %v758
        %v783 = vadd.f32 %v619, %v759
        %v784 = vperm.slane %v585, 1
        %v785 = vperm.slane %v586, 1
        %v786 = vperm.slane %v587, 1
        %v787 = vperm.slane %v588, 1
        %792 = vrot.lane.b32.xlu0 %v784, 112
        %v793 = vpop.permute.xlu0 %792
        %794 = vrot.lane.b32.xlu0 %v785, 112
        %v795 = vpop.permute.xlu0 %794
        %796 = vrot.lane.b32.xlu0 %v786, 112
        %v797 = vpop.permute.xlu0 %796
        %798 = vrot.lane.b32.xlu0 %v787, 112
        %v799 = vpop.permute.xlu0 %798
        %vm800 = vcmask 916480
        %v801 = vsel %vm800, %v793, %v795
        %v802 = vsel %vm800, %v795, %v797
        %v803 = vsel %vm800, %v797, %v799
        %v809 = vmul.f32 %v620, %v793
        %v810 = vmul.f32 %v621, %v801
        %v811 = vmul.f32 %v622, %v802
        %v812 = vmul.f32 %v623, %v803
        %v813 = vmul.f32 %v624, %v799
        %v814 = vmul.f32 %v625, %v793
        %v815 = vmul.f32 %v626, %v801
        %v816 = vmul.f32 %v627, %v802
        %v817 = vmul.f32 %v628, %v803
        %v818 = vmul.f32 %v629, %v799
        %v819 = vmul.f32 %v630, %v793
        %v820 = vmul.f32 %v631, %v801
        %v821 = vmul.f32 %v632, %v802
        %v822 = vmul.f32 %v633, %v803
        %v823 = vmul.f32 %v634, %v799
        %824 = vset.pattern.permute.xlu0 1
        %825 = vperm.xlu0 %824, %v582
        %v826 = vpop.permute.xlu0 %825
        %828 = vset.pattern.permute.xlu0 1
        %829 = vperm.xlu0 %828, %v583
        %v830 = vpop.permute.xlu0 %829
        %832 = vset.pattern.permute.xlu0 1
        %833 = vperm.xlu0 %832, %v584
        %v834 = vpop.permute.xlu0 %833
        %v836 = vmul.f32 %v809, %v826
        %v837 = vmul.f32 %v810, %v826
        %v838 = vmul.f32 %v811, %v826
        %v839 = vmul.f32 %v812, %v826
        %v840 = vmul.f32 %v813, %v826
        %v841 = vmul.f32 %v814, %v830
        %v842 = vmul.f32 %v815, %v830
        %v843 = vmul.f32 %v816, %v830
        %v844 = vmul.f32 %v817, %v830
        %v845 = vmul.f32 %v818, %v830
        %v846 = vmul.f32 %v819, %v834
        %v847 = vmul.f32 %v820, %v834
        %v848 = vmul.f32 %v821, %v834
        %v849 = vmul.f32 %v822, %v834
        %v850 = vmul.f32 %v823, %v834
        %866 = vrot.lane.b32.xlu0 %v836, 16
        %v867 = vpop.permute.xlu0 %866
        %868 = vrot.lane.b32.xlu0 %v837, 16
        %v869 = vpop.permute.xlu0 %868
        %870 = vrot.lane.b32.xlu0 %v838, 16
        %v871 = vpop.permute.xlu0 %870
        %872 = vrot.lane.b32.xlu0 %v839, 16
        %v873 = vpop.permute.xlu0 %872
        %874 = vrot.lane.b32.xlu0 %v840, 16
        %v875 = vpop.permute.xlu0 %874
        %876 = vrot.lane.b32.xlu0 %v841, 16
        %v877 = vpop.permute.xlu0 %876
        %878 = vrot.lane.b32.xlu0 %v842, 16
        %v879 = vpop.permute.xlu0 %878
        %880 = vrot.lane.b32.xlu0 %v843, 16
        %v881 = vpop.permute.xlu0 %880
        %882 = vrot.lane.b32.xlu0 %v844, 16
        %v883 = vpop.permute.xlu0 %882
        %884 = vrot.lane.b32.xlu0 %v845, 16
        %v885 = vpop.permute.xlu0 %884
        %886 = vrot.lane.b32.xlu0 %v846, 16
        %v887 = vpop.permute.xlu0 %886
        %888 = vrot.lane.b32.xlu0 %v847, 16
        %v889 = vpop.permute.xlu0 %888
        %890 = vrot.lane.b32.xlu0 %v848, 16
        %v891 = vpop.permute.xlu0 %890
        %892 = vrot.lane.b32.xlu0 %v849, 16
        %v893 = vpop.permute.xlu0 %892
        %894 = vrot.lane.b32.xlu0 %v850, 16
        %v895 = vpop.permute.xlu0 %894
        %vm896 = vcmask 130048
        %v897 = vsel %vm896, %v867, %v869
        %v898 = vsel %vm896, %v869, %v871
        %v899 = vsel %vm896, %v871, %v873
        %v900 = vsel %vm896, %v873, %v875
        %v901 = vsel %vm896, %v877, %v879
        %v902 = vsel %vm896, %v879, %v881
        %v903 = vsel %vm896, %v881, %v883
        %v904 = vsel %vm896, %v883, %v885
        %v905 = vsel %vm896, %v887, %v889
        %v906 = vsel %vm896, %v889, %v891
        %v907 = vsel %vm896, %v891, %v893
        %v908 = vsel %vm896, %v893, %v895
        %v921 = vadd.f32 %v772, %v897
        %v922 = vadd.f32 %v773, %v898
        %v923 = vadd.f32 %v774, %v899
        %v924 = vadd.f32 %v775, %v900
        %v925 = vadd.f32 %v776, %v901
        %v926 = vadd.f32 %v777, %v902
        %v927 = vadd.f32 %v778, %v903
        %v928 = vadd.f32 %v779, %v904
        %v929 = vadd.f32 %v780, %v905
        %v930 = vadd.f32 %v781, %v906
        %v931 = vadd.f32 %v782, %v907
        %v932 = vadd.f32 %v783, %v908
        %v933 = vperm.slane %v585, 2
        %v934 = vperm.slane %v586, 2
        %v935 = vperm.slane %v587, 2
        %v936 = vperm.slane %v588, 2
        %941 = vrot.lane.b32.xlu0 %v933, 113
        %v942 = vpop.permute.xlu0 %941
        %943 = vrot.lane.b32.xlu0 %v934, 113
        %v944 = vpop.permute.xlu0 %943
        %945 = vrot.lane.b32.xlu0 %v935, 113
        %v946 = vpop.permute.xlu0 %945
        %947 = vrot.lane.b32.xlu0 %v936, 113
        %v948 = vpop.permute.xlu0 %947
        %vm949 = vcmask 924672
        %v950 = vsel %vm949, %v942, %v944
        %v951 = vsel %vm949, %v944, %v946
        %v952 = vsel %vm949, %v946, %v948
        %v958 = vmul.f32 %v620, %v942
        %v959 = vmul.f32 %v621, %v950
        %v960 = vmul.f32 %v622, %v951
        %v961 = vmul.f32 %v623, %v952
        %v962 = vmul.f32 %v624, %v948
        %v963 = vmul.f32 %v625, %v942
        %v964 = vmul.f32 %v626, %v950
        %v965 = vmul.f32 %v627, %v951
        %v966 = vmul.f32 %v628, %v952
        %v967 = vmul.f32 %v629, %v948
        %v968 = vmul.f32 %v630, %v942
        %v969 = vmul.f32 %v631, %v950
        %v970 = vmul.f32 %v632, %v951
        %v971 = vmul.f32 %v633, %v952
        %v972 = vmul.f32 %v634, %v948
        %973 = vset.pattern.permute.xlu0 2
        %974 = vperm.xlu0 %973, %v582
        %v975 = vpop.permute.xlu0 %974
        %977 = vset.pattern.permute.xlu0 2
        %978 = vperm.xlu0 %977, %v583
        %v979 = vpop.permute.xlu0 %978
        %981 = vset.pattern.permute.xlu0 2
        %982 = vperm.xlu0 %981, %v584
        %v983 = vpop.permute.xlu0 %982
        %v985 = vmul.f32 %v958, %v975
        %v986 = vmul.f32 %v959, %v975
        %v987 = vmul.f32 %v960, %v975
        %v988 = vmul.f32 %v961, %v975
        %v989 = vmul.f32 %v962, %v975
        %v990 = vmul.f32 %v963, %v979
        %v991 = vmul.f32 %v964, %v979
        %v992 = vmul.f32 %v965, %v979
        %v993 = vmul.f32 %v966, %v979
        %v994 = vmul.f32 %v967, %v979
        %v995 = vmul.f32 %v968, %v983
        %v996 = vmul.f32 %v969, %v983
        %v997 = vmul.f32 %v970, %v983
        %v998 = vmul.f32 %v971, %v983
        %v999 = vmul.f32 %v972, %v983
        %1015 = vrot.lane.b32.xlu0 %v985, 15
        %v1016 = vpop.permute.xlu0 %1015
        %1017 = vrot.lane.b32.xlu0 %v986, 15
        %v1018 = vpop.permute.xlu0 %1017
        %1019 = vrot.lane.b32.xlu0 %v987, 15
        %v1020 = vpop.permute.xlu0 %1019
        %1021 = vrot.lane.b32.xlu0 %v988, 15
        %v1022 = vpop.permute.xlu0 %1021
        %1023 = vrot.lane.b32.xlu0 %v989, 15
        %v1024 = vpop.permute.xlu0 %1023
        %1025 = vrot.lane.b32.xlu0 %v990, 15
        %v1026 = vpop.permute.xlu0 %1025
        %1027 = vrot.lane.b32.xlu0 %v991, 15
        %v1028 = vpop.permute.xlu0 %1027
        %1029 = vrot.lane.b32.xlu0 %v992, 15
        %v1030 = vpop.permute.xlu0 %1029
        %1031 = vrot.lane.b32.xlu0 %v993, 15
        %v1032 = vpop.permute.xlu0 %1031
        %1033 = vrot.lane.b32.xlu0 %v994, 15
        %v1034 = vpop.permute.xlu0 %1033
        %1035 = vrot.lane.b32.xlu0 %v995, 15
        %v1036 = vpop.permute.xlu0 %1035
        %1037 = vrot.lane.b32.xlu0 %v996, 15
        %v1038 = vpop.permute.xlu0 %1037
        %1039 = vrot.lane.b32.xlu0 %v997, 15
        %v1040 = vpop.permute.xlu0 %1039
        %1041 = vrot.lane.b32.xlu0 %v998, 15
        %v1042 = vpop.permute.xlu0 %1041
        %1043 = vrot.lane.b32.xlu0 %v999, 15
        %v1044 = vpop.permute.xlu0 %1043
        %vm1045 = vcmask 121856
        %v1046 = vsel %vm1045, %v1016, %v1018
        %v1047 = vsel %vm1045, %v1018, %v1020
        %v1048 = vsel %vm1045, %v1020, %v1022
        %v1049 = vsel %vm1045, %v1022, %v1024
        %v1050 = vsel %vm1045, %v1026, %v1028
        %v1051 = vsel %vm1045, %v1028, %v1030
        %v1052 = vsel %vm1045, %v1030, %v1032
        %v1053 = vsel %vm1045, %v1032, %v1034
        %v1054 = vsel %vm1045, %v1036, %v1038
        %v1055 = vsel %vm1045, %v1038, %v1040
        %v1056 = vsel %vm1045, %v1040, %v1042
        %v1057 = vsel %vm1045, %v1042, %v1044
        %v1070 = vadd.f32 %v921, %v1046
        %v1071 = vadd.f32 %v922, %v1047
        %v1072 = vadd.f32 %v923, %v1048
        %v1073 = vadd.f32 %v924, %v1049
        %v1074 = vadd.f32 %v925, %v1050
        %v1075 = vadd.f32 %v926, %v1051
        %v1076 = vadd.f32 %v927, %v1052
        %v1077 = vadd.f32 %v928, %v1053
        %v1078 = vadd.f32 %v929, %v1054
        %v1079 = vadd.f32 %v930, %v1055
        %v1080 = vadd.f32 %v931, %v1056
        %v1081 = vadd.f32 %v932, %v1057
        %v1082 = vperm.slane %v585, 3
        %v1083 = vperm.slane %v586, 3
        %v1084 = vperm.slane %v587, 3
        %v1085 = vperm.slane %v588, 3
        %1090 = vrot.lane.b32.xlu0 %v1082, 127
        %v1091 = vpop.permute.xlu0 %1090
        %1092 = vrot.lane.b32.xlu0 %v1083, 127
        %v1093 = vpop.permute.xlu0 %1092
        %1094 = vrot.lane.b32.xlu0 %v1084, 127
        %v1095 = vpop.permute.xlu0 %1094
        %1096 = vrot.lane.b32.xlu0 %v1085, 127
        %v1097 = vpop.permute.xlu0 %1096
        %vm1098 = vcmask 1039360
        %v1099 = vsel %vm1098, %v1091, %v1093
        %v1100 = vsel %vm1098, %v1093, %v1095
        %v1101 = vsel %vm1098, %v1095, %v1097
        %v1107 = vmul.f32 %v620, %v1091
        %v1108 = vmul.f32 %v621, %v1099
        %v1109 = vmul.f32 %v622, %v1100
        %v1110 = vmul.f32 %v623, %v1101
        %v1111 = vmul.f32 %v624, %v1097
        %v1112 = vmul.f32 %v625, %v1091
        %v1113 = vmul.f32 %v626, %v1099
        %v1114 = vmul.f32 %v627, %v1100
        %v1115 = vmul.f32 %v628, %v1101
        %v1116 = vmul.f32 %v629, %v1097
        %v1117 = vmul.f32 %v630, %v1091
        %v1118 = vmul.f32 %v631, %v1099
        %v1119 = vmul.f32 %v632, %v1100
        %v1120 = vmul.f32 %v633, %v1101
        %v1121 = vmul.f32 %v634, %v1097
        %1122 = vset.pattern.permute.xlu0 3
        %1123 = vperm.xlu0 %1122, %v582
        %v1124 = vpop.permute.xlu0 %1123
        %1126 = vset.pattern.permute.xlu0 3
        %1127 = vperm.xlu0 %1126, %v583
        %v1128 = vpop.permute.xlu0 %1127
        %1130 = vset.pattern.permute.xlu0 3
        %1131 = vperm.xlu0 %1130, %v584
        %v1132 = vpop.permute.xlu0 %1131
        %v1134 = vmul.f32 %v1107, %v1124
        %v1135 = vmul.f32 %v1108, %v1124
        %v1136 = vmul.f32 %v1109, %v1124
        %v1137 = vmul.f32 %v1110, %v1124
        %v1138 = vmul.f32 %v1111, %v1124
        %v1139 = vmul.f32 %v1112, %v1128
        %v1140 = vmul.f32 %v1113, %v1128
        %v1141 = vmul.f32 %v1114, %v1128
        %v1142 = vmul.f32 %v1115, %v1128
        %v1143 = vmul.f32 %v1116, %v1128
        %v1144 = vmul.f32 %v1117, %v1132
        %v1145 = vmul.f32 %v1118, %v1132
        %v1146 = vmul.f32 %v1119, %v1132
        %v1147 = vmul.f32 %v1120, %v1132
        %v1148 = vmul.f32 %v1121, %v1132
        %1164 = vrot.lane.b32.xlu0 %v1134, 1
        %v1165 = vpop.permute.xlu0 %1164
        %1166 = vrot.lane.b32.xlu0 %v1135, 1
        %v1167 = vpop.permute.xlu0 %1166
        %1168 = vrot.lane.b32.xlu0 %v1136, 1
        %v1169 = vpop.permute.xlu0 %1168
        %1170 = vrot.lane.b32.xlu0 %v1137, 1
        %v1171 = vpop.permute.xlu0 %1170
        %1172 = vrot.lane.b32.xlu0 %v1138, 1
        %v1173 = vpop.permute.xlu0 %1172
        %1174 = vrot.lane.b32.xlu0 %v1139, 1
        %v1175 = vpop.permute.xlu0 %1174
        %1176 = vrot.lane.b32.xlu0 %v1140, 1
        %v1177 = vpop.permute.xlu0 %1176
        %1178 = vrot.lane.b32.xlu0 %v1141, 1
        %v1179 = vpop.permute.xlu0 %1178
        %1180 = vrot.lane.b32.xlu0 %v1142, 1
        %v1181 = vpop.permute.xlu0 %1180
        %1182 = vrot.lane.b32.xlu0 %v1143, 1
        %v1183 = vpop.permute.xlu0 %1182
        %1184 = vrot.lane.b32.xlu0 %v1144, 1
        %v1185 = vpop.permute.xlu0 %1184
        %1186 = vrot.lane.b32.xlu0 %v1145, 1
        %v1187 = vpop.permute.xlu0 %1186
        %1188 = vrot.lane.b32.xlu0 %v1146, 1
        %v1189 = vpop.permute.xlu0 %1188
        %1190 = vrot.lane.b32.xlu0 %v1147, 1
        %v1191 = vpop.permute.xlu0 %1190
        %1192 = vrot.lane.b32.xlu0 %v1148, 1
        %v1193 = vpop.permute.xlu0 %1192
        %vm1194 = vcmask 7168
        %v1195 = vsel %vm1194, %v1165, %v1167
        %v1196 = vsel %vm1194, %v1167, %v1169
        %v1197 = vsel %vm1194, %v1169, %v1171
        %v1198 = vsel %vm1194, %v1171, %v1173
        %v1199 = vsel %vm1194, %v1175, %v1177
        %v1200 = vsel %vm1194, %v1177, %v1179
        %v1201 = vsel %vm1194, %v1179, %v1181
        %v1202 = vsel %vm1194, %v1181, %v1183
        %v1203 = vsel %vm1194, %v1185, %v1187
        %v1204 = vsel %vm1194, %v1187, %v1189
        %v1205 = vsel %vm1194, %v1189, %v1191
        %v1206 = vsel %vm1194, %v1191, %v1193
        %v1219 = vadd.f32 %v1070, %v1195
        %v1220 = vadd.f32 %v1071, %v1196
        %v1221 = vadd.f32 %v1072, %v1197
        %v1222 = vadd.f32 %v1073, %v1198
        %v1223 = vadd.f32 %v1074, %v1199
        %v1224 = vadd.f32 %v1075, %v1200
        %v1225 = vadd.f32 %v1076, %v1201
        %v1226 = vadd.f32 %v1077, %v1202
        %v1227 = vadd.f32 %v1078, %v1203
        %v1228 = vadd.f32 %v1079, %v1204
        %v1229 = vadd.f32 %v1080, %v1205
        %v1230 = vadd.f32 %v1081, %v1206
        %v1231 = vld [vmem:[#allocation2 + $0x8] sm:$0xff]
        %v1232 = vld [vmem:[#allocation2 + $0x10] sm:$0xff]
        %v1233 = vld [vmem:[#allocation2 + $0x18] sm:$0xff]
        %v1234 = vld [vmem:[#allocation2 + $0x20] sm:$0xff]
        %v1235 = vld [vmem:[#allocation2 + $0x28] sm:$0xff]
        %v1236 = vld [vmem:[#allocation2 + $0x38] sm:$0xff]
        %v1237 = vld [vmem:[#allocation2 + $0x40] sm:$0xff]
        %v1238 = vld [vmem:[#allocation2 + $0x48] sm:$0xff]
        %v1239 = vld [vmem:[#allocation2 + $0x50] sm:$0xff]
        %v1240 = vld [vmem:[#allocation2 + $0x58] sm:$0xff]
        %v1241 = vld [vmem:[#allocation2 + $0x68] sm:$0xff]
        %v1242 = vld [vmem:[#allocation2 + $0x70] sm:$0xff]
        %v1243 = vld [vmem:[#allocation2 + $0x78] sm:$0xff]
        %v1244 = vld [vmem:[#allocation2 + $0x80] sm:$0xff]
        %v1245 = vld [vmem:[#allocation2 + $0x88] sm:$0xff]
        %v1246 = vperm.slane %v585, 5
        %v1247 = vperm.slane %v586, 5
        %v1248 = vperm.slane %v587, 5
        %v1249 = vperm.slane %v588, 5
        %1254 = vrot.lane.b32.xlu0 %v1246, 1
        %v1255 = vpop.permute.xlu0 %1254
        %1256 = vrot.lane.b32.xlu0 %v1247, 1
        %v1257 = vpop.permute.xlu0 %1256
        %1258 = vrot.lane.b32.xlu0 %v1248, 1
        %v1259 = vpop.permute.xlu0 %1258
        %1260 = vrot.lane.b32.xlu0 %v1249, 1
        %v1261 = vpop.permute.xlu0 %1260
        %v1262 = vsel %vm1194, %v1255, %v1257
        %v1263 = vsel %vm1194, %v1257, %v1259
        %v1264 = vsel %vm1194, %v1259, %v1261
        %v1270 = vmul.f32 %v1231, %v1255
        %v1271 = vmul.f32 %v1232, %v1262
        %v1272 = vmul.f32 %v1233, %v1263
        %v1273 = vmul.f32 %v1234, %v1264
        %v1274 = vmul.f32 %v1235, %v1261
        %v1275 = vmul.f32 %v1236, %v1255
        %v1276 = vmul.f32 %v1237, %v1262
        %v1277 = vmul.f32 %v1238, %v1263
        %v1278 = vmul.f32 %v1239, %v1264
        %v1279 = vmul.f32 %v1240, %v1261
        %v1280 = vmul.f32 %v1241, %v1255
        %v1281 = vmul.f32 %v1242, %v1262
        %v1282 = vmul.f32 %v1243, %v1263
        %v1283 = vmul.f32 %v1244, %v1264
        %v1284 = vmul.f32 %v1245, %v1261
        %1285 = vset.pattern.permute.xlu0 5
        %1286 = vperm.xlu0 %1285, %v582
        %v1287 = vpop.permute.xlu0 %1286
        %1289 = vset.pattern.permute.xlu0 5
        %1290 = vperm.xlu0 %1289, %v583
        %v1291 = vpop.permute.xlu0 %1290
        %1293 = vset.pattern.permute.xlu0 5
        %1294 = vperm.xlu0 %1293, %v584
        %v1295 = vpop.permute.xlu0 %1294
        %v1297 = vmul.f32 %v1270, %v1287
        %v1298 = vmul.f32 %v1271, %v1287
        %v1299 = vmul.f32 %v1272, %v1287
        %v1300 = vmul.f32 %v1273, %v1287
        %v1301 = vmul.f32 %v1274, %v1287
        %v1302 = vmul.f32 %v1275, %v1291
        %v1303 = vmul.f32 %v1276, %v1291
        %v1304 = vmul.f32 %v1277, %v1291
        %v1305 = vmul.f32 %v1278, %v1291
        %v1306 = vmul.f32 %v1279, %v1291
        %v1307 = vmul.f32 %v1280, %v1295
        %v1308 = vmul.f32 %v1281, %v1295
        %v1309 = vmul.f32 %v1282, %v1295
        %v1310 = vmul.f32 %v1283, %v1295
        %v1311 = vmul.f32 %v1284, %v1295
        %1327 = vrot.lane.b32.xlu0 %v1297, 127
        %v1328 = vpop.permute.xlu0 %1327
        %1329 = vrot.lane.b32.xlu0 %v1298, 127
        %v1330 = vpop.permute.xlu0 %1329
        %1331 = vrot.lane.b32.xlu0 %v1299, 127
        %v1332 = vpop.permute.xlu0 %1331
        %1333 = vrot.lane.b32.xlu0 %v1300, 127
        %v1334 = vpop.permute.xlu0 %1333
        %1335 = vrot.lane.b32.xlu0 %v1301, 127
        %v1336 = vpop.permute.xlu0 %1335
        %1337 = vrot.lane.b32.xlu0 %v1302, 127
        %v1338 = vpop.permute.xlu0 %1337
        %1339 = vrot.lane.b32.xlu0 %v1303, 127
        %v1340 = vpop.permute.xlu0 %1339
        %1341 = vrot.lane.b32.xlu0 %v1304, 127
        %v1342 = vpop.permute.xlu0 %1341
        %1343 = vrot.lane.b32.xlu0 %v1305, 127
        %v1344 = vpop.permute.xlu0 %1343
        %1345 = vrot.lane.b32.xlu0 %v1306, 127
        %v1346 = vpop.permute.xlu0 %1345
        %1347 = vrot.lane.b32.xlu0 %v1307, 127
        %v1348 = vpop.permute.xlu0 %1347
        %1349 = vrot.lane.b32.xlu0 %v1308, 127
        %v1350 = vpop.permute.xlu0 %1349
        %1351 = vrot.lane.b32.xlu0 %v1309, 127
        %v1352 = vpop.permute.xlu0 %1351
        %1353 = vrot.lane.b32.xlu0 %v1310, 127
        %v1354 = vpop.permute.xlu0 %1353
        %1355 = vrot.lane.b32.xlu0 %v1311, 127
        %v1356 = vpop.permute.xlu0 %1355
        %v1357 = vsel %vm1098, %v1328, %v1330
        %v1358 = vsel %vm1098, %v1330, %v1332
        %v1359 = vsel %vm1098, %v1332, %v1334
        %v1360 = vsel %vm1098, %v1334, %v1336
        %v1361 = vsel %vm1098, %v1338, %v1340
        %v1362 = vsel %vm1098, %v1340, %v1342
        %v1363 = vsel %vm1098, %v1342, %v1344
        %v1364 = vsel %vm1098, %v1344, %v1346
        %v1365 = vsel %vm1098, %v1348, %v1350
        %v1366 = vsel %vm1098, %v1350, %v1352
        %v1367 = vsel %vm1098, %v1352, %v1354
        %v1368 = vsel %vm1098, %v1354, %v1356
        %v1381 = vadd.f32 %v1219, %v1357
        %v1382 = vadd.f32 %v1220, %v1358
        %v1383 = vadd.f32 %v1221, %v1359
        %v1384 = vadd.f32 %v1222, %v1360
        %v1385 = vadd.f32 %v1223, %v1361
        %v1386 = vadd.f32 %v1224, %v1362
        %v1387 = vadd.f32 %v1225, %v1363
        %v1388 = vadd.f32 %v1226, %v1364
        %v1389 = vadd.f32 %v1227, %v1365
        %v1390 = vadd.f32 %v1228, %v1366
        %v1391 = vadd.f32 %v1229, %v1367
        %v1392 = vadd.f32 %v1230, %v1368
        %v1393 = vperm.slane %v585, 6
        %v1394 = vperm.slane %v586, 6
        %v1395 = vperm.slane %v587, 6
        %v1396 = vperm.slane %v588, 6
        %1401 = vrot.lane.b32.xlu0 %v1393, 15
        %v1402 = vpop.permute.xlu0 %1401
        %1403 = vrot.lane.b32.xlu0 %v1394, 15
        %v1404 = vpop.permute.xlu0 %1403
        %1405 = vrot.lane.b32.xlu0 %v1395, 15
        %v1406 = vpop.permute.xlu0 %1405
        %1407 = vrot.lane.b32.xlu0 %v1396, 15
        %v1408 = vpop.permute.xlu0 %1407
        %v1409 = vsel %vm1045, %v1402, %v1404
        %v1410 = vsel %vm1045, %v1404, %v1406
        %v1411 = vsel %vm1045, %v1406, %v1408
        %v1417 = vmul.f32 %v1231, %v1402
        %v1418 = vmul.f32 %v1232, %v1409
        %v1419 = vmul.f32 %v1233, %v1410
        %v1420 = vmul.f32 %v1234, %v1411
        %v1421 = vmul.f32 %v1235, %v1408
        %v1422 = vmul.f32 %v1236, %v1402
        %v1423 = vmul.f32 %v1237, %v1409
        %v1424 = vmul.f32 %v1238, %v1410
        %v1425 = vmul.f32 %v1239, %v1411
        %v1426 = vmul.f32 %v1240, %v1408
        %v1427 = vmul.f32 %v1241, %v1402
        %v1428 = vmul.f32 %v1242, %v1409
        %v1429 = vmul.f32 %v1243, %v1410
        %v1430 = vmul.f32 %v1244, %v1411
        %v1431 = vmul.f32 %v1245, %v1408
        %1432 = vset.pattern.permute.xlu0 6
        %1433 = vperm.xlu0 %1432, %v582
        %v1434 = vpop.permute.xlu0 %1433
        %1436 = vset.pattern.permute.xlu0 6
        %1437 = vperm.xlu0 %1436, %v583
        %v1438 = vpop.permute.xlu0 %1437
        %1440 = vset.pattern.permute.xlu0 6
        %1441 = vperm.xlu0 %1440, %v584
        %v1442 = vpop.permute.xlu0 %1441
        %v1444 = vmul.f32 %v1417, %v1434
        %v1445 = vmul.f32 %v1418, %v1434
        %v1446 = vmul.f32 %v1419, %v1434
        %v1447 = vmul.f32 %v1420, %v1434
        %v1448 = vmul.f32 %v1421, %v1434
        %v1449 = vmul.f32 %v1422, %v1438
        %v1450 = vmul.f32 %v1423, %v1438
        %v1451 = vmul.f32 %v1424, %v1438
        %v1452 = vmul.f32 %v1425, %v1438
        %v1453 = vmul.f32 %v1426, %v1438
        %v1454 = vmul.f32 %v1427, %v1442
        %v1455 = vmul.f32 %v1428, %v1442
        %v1456 = vmul.f32 %v1429, %v1442
        %v1457 = vmul.f32 %v1430, %v1442
        %v1458 = vmul.f32 %v1431, %v1442
        %1474 = vrot.lane.b32.xlu0 %v1444, 113
        %v1475 = vpop.permute.xlu0 %1474
        %1476 = vrot.lane.b32.xlu0 %v1445, 113
        %v1477 = vpop.permute.xlu0 %1476
        %1478 = vrot.lane.b32.xlu0 %v1446, 113
        %v1479 = vpop.permute.xlu0 %1478
        %1480 = vrot.lane.b32.xlu0 %v1447, 113
        %v1481 = vpop.permute.xlu0 %1480
        %1482 = vrot.lane.b32.xlu0 %v1448, 113
        %v1483 = vpop.permute.xlu0 %1482
        %1484 = vrot.lane.b32.xlu0 %v1449, 113
        %v1485 = vpop.permute.xlu0 %1484
        %1486 = vrot.lane.b32.xlu0 %v1450, 113
        %v1487 = vpop.permute.xlu0 %1486
        %1488 = vrot.lane.b32.xlu0 %v1451, 113
        %v1489 = vpop.permute.xlu0 %1488
        %1490 = vrot.lane.b32.xlu0 %v1452, 113
        %v1491 = vpop.permute.xlu0 %1490
        %1492 = vrot.lane.b32.xlu0 %v1453, 113
        %v1493 = vpop.permute.xlu0 %1492
        %1494 = vrot.lane.b32.xlu0 %v1454, 113
        %v1495 = vpop.permute.xlu0 %1494
        %1496 = vrot.lane.b32.xlu0 %v1455, 113
        %v1497 = vpop.permute.xlu0 %1496
        %1498 = vrot.lane.b32.xlu0 %v1456, 113
        %v1499 = vpop.permute.xlu0 %1498
        %1500 = vrot.lane.b32.xlu0 %v1457, 113
        %v1501 = vpop.permute.xlu0 %1500
        %1502 = vrot.lane.b32.xlu0 %v1458, 113
        %v1503 = vpop.permute.xlu0 %1502
        %v1504 = vsel %vm949, %v1475, %v1477
        %v1505 = vsel %vm949, %v1477, %v1479
        %v1506 = vsel %vm949, %v1479, %v1481
        %v1507 = vsel %vm949, %v1481, %v1483
        %v1508 = vsel %vm949, %v1485, %v1487
        %v1509 = vsel %vm949, %v1487, %v1489
        %v1510 = vsel %vm949, %v1489, %v1491
        %v1511 = vsel %vm949, %v1491, %v1493
        %v1512 = vsel %vm949, %v1495, %v1497
        %v1513 = vsel %vm949, %v1497, %v1499
        %v1514 = vsel %vm949, %v1499, %v1501
        %v1515 = vsel %vm949, %v1501, %v1503
        %v1528 = vadd.f32 %v1381, %v1504
        %v1529 = vadd.f32 %v1382, %v1505
        %v1530 = vadd.f32 %v1383, %v1506
        %v1531 = vadd.f32 %v1384, %v1507
        %v1532 = vadd.f32 %v1385, %v1508
        %v1533 = vadd.f32 %v1386, %v1509
        %v1534 = vadd.f32 %v1387, %v1510
        %v1535 = vadd.f32 %v1388, %v1511
        %v1536 = vadd.f32 %v1389, %v1512
        %v1537 = vadd.f32 %v1390, %v1513
        %v1538 = vadd.f32 %v1391, %v1514
        %v1539 = vadd.f32 %v1392, %v1515
        %v1540 = vperm.slane %v585, 7
        %v1541 = vperm.slane %v586, 7
        %v1542 = vperm.slane %v587, 7
        %v1543 = vperm.slane %v588, 7
        %1548 = vrot.lane.b32.xlu0 %v1540, 16
        %v1549 = vpop.permute.xlu0 %1548
        %1550 = vrot.lane.b32.xlu0 %v1541, 16
        %v1551 = vpop.permute.xlu0 %1550
        %1552 = vrot.lane.b32.xlu0 %v1542, 16
        %v1553 = vpop.permute.xlu0 %1552
        %1554 = vrot.lane.b32.xlu0 %v1543, 16
        %v1555 = vpop.permute.xlu0 %1554
        %v1556 = vsel %vm896, %v1549, %v1551
        %v1557 = vsel %vm896, %v1551, %v1553
        %v1558 = vsel %vm896, %v1553, %v1555
        %v1564 = vmul.f32 %v1231, %v1549
        %v1565 = vmul.f32 %v1232, %v1556
        %v1566 = vmul.f32 %v1233, %v1557
        %v1567 = vmul.f32 %v1234, %v1558
        %v1568 = vmul.f32 %v1235, %v1555
        %v1569 = vmul.f32 %v1236, %v1549
        %v1570 = vmul.f32 %v1237, %v1556
        %v1571 = vmul.f32 %v1238, %v1557
        %v1572 = vmul.f32 %v1239, %v1558
        %v1573 = vmul.f32 %v1240, %v1555
        %v1574 = vmul.f32 %v1241, %v1549
        %v1575 = vmul.f32 %v1242, %v1556
        %v1576 = vmul.f32 %v1243, %v1557
        %v1577 = vmul.f32 %v1244, %v1558
        %v1578 = vmul.f32 %v1245, %v1555
        %1579 = vset.pattern.permute.xlu0 7
        %1580 = vperm.xlu0 %1579, %v582
        %v1581 = vpop.permute.xlu0 %1580
        %1583 = vset.pattern.permute.xlu0 7
        %1584 = vperm.xlu0 %1583, %v583
        %v1585 = vpop.permute.xlu0 %1584
        %1587 = vset.pattern.permute.xlu0 7
        %1588 = vperm.xlu0 %1587, %v584
        %v1589 = vpop.permute.xlu0 %1588
        %v1591 = vmul.f32 %v1564, %v1581
        %v1592 = vmul.f32 %v1565, %v1581
        %v1593 = vmul.f32 %v1566, %v1581
        %v1594 = vmul.f32 %v1567, %v1581
        %v1595 = vmul.f32 %v1568, %v1581
        %v1596 = vmul.f32 %v1569, %v1585
        %v1597 = vmul.f32 %v1570, %v1585
        %v1598 = vmul.f32 %v1571, %v1585
        %v1599 = vmul.f32 %v1572, %v1585
        %v1600 = vmul.f32 %v1573, %v1585
        %v1601 = vmul.f32 %v1574, %v1589
        %v1602 = vmul.f32 %v1575, %v1589
        %v1603 = vmul.f32 %v1576, %v1589
        %v1604 = vmul.f32 %v1577, %v1589
        %v1605 = vmul.f32 %v1578, %v1589
        %1621 = vrot.lane.b32.xlu0 %v1591, 112
        %v1622 = vpop.permute.xlu0 %1621
        %1623 = vrot.lane.b32.xlu0 %v1592, 112
        %v1624 = vpop.permute.xlu0 %1623
        %1625 = vrot.lane.b32.xlu0 %v1593, 112
        %v1626 = vpop.permute.xlu0 %1625
        %1627 = vrot.lane.b32.xlu0 %v1594, 112
        %v1628 = vpop.permute.xlu0 %1627
        %1629 = vrot.lane.b32.xlu0 %v1595, 112
        %v1630 = vpop.permute.xlu0 %1629
        %1631 = vrot.lane.b32.xlu0 %v1596, 112
        %v1632 = vpop.permute.xlu0 %1631
        %1633 = vrot.lane.b32.xlu0 %v1597, 112
        %v1634 = vpop.permute.xlu0 %1633
        %1635 = vrot.lane.b32.xlu0 %v1598, 112
        %v1636 = vpop.permute.xlu0 %1635
        %1637 = vrot.lane.b32.xlu0 %v1599, 112
        %v1638 = vpop.permute.xlu0 %1637
        %1639 = vrot.lane.b32.xlu0 %v1600, 112
        %v1640 = vpop.permute.xlu0 %1639
        %1641 = vrot.lane.b32.xlu0 %v1601, 112
        %v1642 = vpop.permute.xlu0 %1641
        %1643 = vrot.lane.b32.xlu0 %v1602, 112
        %v1644 = vpop.permute.xlu0 %1643
        %1645 = vrot.lane.b32.xlu0 %v1603, 112
        %v1646 = vpop.permute.xlu0 %1645
        %1647 = vrot.lane.b32.xlu0 %v1604, 112
        %v1648 = vpop.permute.xlu0 %1647
        %1649 = vrot.lane.b32.xlu0 %v1605, 112
        %v1650 = vpop.permute.xlu0 %1649
        %v1651 = vsel %vm800, %v1622, %v1624
        %v1652 = vsel %vm800, %v1624, %v1626
        %v1653 = vsel %vm800, %v1626, %v1628
        %v1654 = vsel %vm800, %v1628, %v1630
        %v1655 = vsel %vm800, %v1632, %v1634
        %v1656 = vsel %vm800, %v1634, %v1636
        %v1657 = vsel %vm800, %v1636, %v1638
        %v1658 = vsel %vm800, %v1638, %v1640
        %v1659 = vsel %vm800, %v1642, %v1644
        %v1660 = vsel %vm800, %v1644, %v1646
        %v1661 = vsel %vm800, %v1646, %v1648
        %v1662 = vsel %vm800, %v1648, %v1650
        %v1675 = vadd.f32 %v1528, %v1651
        %v1676 = vadd.f32 %v1529, %v1652
        %v1677 = vadd.f32 %v1530, %v1653
        %v1678 = vadd.f32 %v1531, %v1654
        %v1679 = vadd.f32 %v1532, %v1655
        %v1680 = vadd.f32 %v1533, %v1656
        %v1681 = vadd.f32 %v1534, %v1657
        %v1682 = vadd.f32 %v1535, %v1658
        %v1683 = vadd.f32 %v1536, %v1659
        %v1684 = vadd.f32 %v1537, %v1660
        %v1685 = vadd.f32 %v1538, %v1661
        %v1686 = vadd.f32 %v1539, %v1662
        %v1687 = vperm.slane %v589, 0
        %v1688 = vperm.slane %v590, 0
        %v1689 = vperm.slane %v591, 0
        %v1690 = vperm.slane %v592, 0
        %1695 = vrot.lane.b32.xlu0 %v1687, 17
        %v1696 = vpop.permute.xlu0 %1695
        %1697 = vrot.lane.b32.xlu0 %v1688, 17
        %v1698 = vpop.permute.xlu0 %1697
        %1699 = vrot.lane.b32.xlu0 %v1689, 17
        %v1700 = vpop.permute.xlu0 %1699
        %1701 = vrot.lane.b32.xlu0 %v1690, 17
        %v1702 = vpop.permute.xlu0 %1701
        %v1703 = vsel %vm747, %v1696, %v1698
        %v1704 = vsel %vm747, %v1698, %v1700
        %v1705 = vsel %vm747, %v1700, %v1702
        %v1711 = vmul.f32 %v1231, %v1696
        %v1712 = vmul.f32 %v1232, %v1703
        %v1713 = vmul.f32 %v1233, %v1704
        %v1714 = vmul.f32 %v1234, %v1705
        %v1715 = vmul.f32 %v1235, %v1702
        %v1716 = vmul.f32 %v1236, %v1696
        %v1717 = vmul.f32 %v1237, %v1703
        %v1718 = vmul.f32 %v1238, %v1704
        %v1719 = vmul.f32 %v1239, %v1705
        %v1720 = vmul.f32 %v1240, %v1702
        %v1721 = vmul.f32 %v1241, %v1696
        %v1722 = vmul.f32 %v1242, %v1703
        %v1723 = vmul.f32 %v1243, %v1704
        %v1724 = vmul.f32 %v1244, %v1705
        %v1725 = vmul.f32 %v1245, %v1702
        %1726 = vset.pattern.permute.xlu0 8
        %1727 = vperm.xlu0 %1726, %v582
        %v1728 = vpop.permute.xlu0 %1727
        %1730 = vset.pattern.permute.xlu0 8
        %1731 = vperm.xlu0 %1730, %v583
        %v1732 = vpop.permute.xlu0 %1731
        %1734 = vset.pattern.permute.xlu0 8
        %1735 = vperm.xlu0 %1734, %v584
        %v1736 = vpop.permute.xlu0 %1735
        %v1738 = vmul.f32 %v1711, %v1728
        %v1739 = vmul.f32 %v1712, %v1728
        %v1740 = vmul.f32 %v1713, %v1728
        %v1741 = vmul.f32 %v1714, %v1728
        %v1742 = vmul.f32 %v1715, %v1728
        %v1743 = vmul.f32 %v1716, %v1732
        %v1744 = vmul.f32 %v1717, %v1732
        %v1745 = vmul.f32 %v1718, %v1732
        %v1746 = vmul.f32 %v1719, %v1732
        %v1747 = vmul.f32 %v1720, %v1732
        %v1748 = vmul.f32 %v1721, %v1736
        %v1749 = vmul.f32 %v1722, %v1736
        %v1750 = vmul.f32 %v1723, %v1736
        %v1751 = vmul.f32 %v1724, %v1736
        %v1752 = vmul.f32 %v1725, %v1736
        %1768 = vrot.lane.b32.xlu0 %v1738, 111
        %v1769 = vpop.permute.xlu0 %1768
        %1770 = vrot.lane.b32.xlu0 %v1739, 111
        %v1771 = vpop.permute.xlu0 %1770
        %1772 = vrot.lane.b32.xlu0 %v1740, 111
        %v1773 = vpop.permute.xlu0 %1772
        %1774 = vrot.lane.b32.xlu0 %v1741, 111
        %v1775 = vpop.permute.xlu0 %1774
        %1776 = vrot.lane.b32.xlu0 %v1742, 111
        %v1777 = vpop.permute.xlu0 %1776
        %1778 = vrot.lane.b32.xlu0 %v1743, 111
        %v1779 = vpop.permute.xlu0 %1778
        %1780 = vrot.lane.b32.xlu0 %v1744, 111
        %v1781 = vpop.permute.xlu0 %1780
        %1782 = vrot.lane.b32.xlu0 %v1745, 111
        %v1783 = vpop.permute.xlu0 %1782
        %1784 = vrot.lane.b32.xlu0 %v1746, 111
        %v1785 = vpop.permute.xlu0 %1784
        %1786 = vrot.lane.b32.xlu0 %v1747, 111
        %v1787 = vpop.permute.xlu0 %1786
        %1788 = vrot.lane.b32.xlu0 %v1748, 111
        %v1789 = vpop.permute.xlu0 %1788
        %1790 = vrot.lane.b32.xlu0 %v1749, 111
        %v1791 = vpop.permute.xlu0 %1790
        %1792 = vrot.lane.b32.xlu0 %v1750, 111
        %v1793 = vpop.permute.xlu0 %1792
        %1794 = vrot.lane.b32.xlu0 %v1751, 111
        %v1795 = vpop.permute.xlu0 %1794
        %1796 = vrot.lane.b32.xlu0 %v1752, 111
        %v1797 = vpop.permute.xlu0 %1796
        %v1798 = vsel %vm651, %v1769, %v1771
        %v1799 = vsel %vm651, %v1771, %v1773
        %v1800 = vsel %vm651, %v1773, %v1775
        %v1801 = vsel %vm651, %v1775, %v1777
        %v1802 = vsel %vm651, %v1779, %v1781
        %v1803 = vsel %vm651, %v1781, %v1783
        %v1804 = vsel %vm651, %v1783, %v1785
        %v1805 = vsel %vm651, %v1785, %v1787
        %v1806 = vsel %vm651, %v1789, %v1791
        %v1807 = vsel %vm651, %v1791, %v1793
        %v1808 = vsel %vm651, %v1793, %v1795
        %v1809 = vsel %vm651, %v1795, %v1797
        %v1822 = vadd.f32 %v1675, %v1798
        %v1823 = vadd.f32 %v1676, %v1799
        %v1824 = vadd.f32 %v1677, %v1800
        %v1825 = vadd.f32 %v1678, %v1801
        %v1826 = vadd.f32 %v1679, %v1802
        %v1827 = vadd.f32 %v1680, %v1803
        %v1828 = vadd.f32 %v1681, %v1804
        %v1829 = vadd.f32 %v1682, %v1805
        %v1830 = vadd.f32 %v1683, %v1806
        %v1831 = vadd.f32 %v1684, %v1807
        %v1832 = vadd.f32 %v1685, %v1808
        %v1833 = vadd.f32 %v1686, %v1809
        %v1834 = vld [vmem:[%s4] sm:$0xff]
        %v1835 = vld [vmem:[%s4 + $0x8] sm:$0xff]
        %v1836 = vld [vmem:[%s4 + $0x10] sm:$0xff]
        %1838 = vset.pattern.permute.xlu0 0
        %1839 = vperm.xlu0 %1838, %v1834
        %v1840 = vpop.permute.xlu0 %1839
        %1843 = vset.pattern.permute.xlu0 0
        %1844 = vperm.xlu0 %1843, %v1835
        %v1845 = vpop.permute.xlu0 %1844
        %1848 = vset.pattern.permute.xlu0 0
        %1849 = vperm.xlu0 %1848, %v1836
        %v1850 = vpop.permute.xlu0 %1849
        %v1852 = vadd.f32 %v1822, %v1840
        %v1853 = vadd.f32 %v1823, %v1840
        %v1854 = vadd.f32 %v1824, %v1840
        %v1855 = vadd.f32 %v1825, %v1840
        %v1856 = vadd.f32 %v1826, %v1845
        %v1857 = vadd.f32 %v1827, %v1845
        %v1858 = vadd.f32 %v1828, %v1845
        %v1859 = vadd.f32 %v1829, %v1845
        %v1860 = vadd.f32 %v1830, %v1850
        %v1861 = vadd.f32 %v1831, %v1850
        %v1862 = vadd.f32 %v1832, %v1850
        %v1863 = vadd.f32 %v1833, %v1850
        %v1864 = vmax.f32 %v1852, 0.0
        %v1865 = vmax.f32 %v1853, 0.0
        %v1866 = vmax.f32 %v1854, 0.0
        %v1867 = vmax.f32 %v1855, 0.0
        %v1868 = vmax.f32 %v1856, 0.0
        %v1869 = vmax.f32 %v1857, 0.0
        %v1870 = vmax.f32 %v1858, 0.0
        %v1871 = vmax.f32 %v1859, 0.0
        %v1872 = vmax.f32 %v1860, 0.0
        %v1873 = vmax.f32 %v1861, 0.0
        %v1874 = vmax.f32 %v1862, 0.0
        %v1875 = vmax.f32 %v1863, 0.0
        %v1876 = vmin.f32 %v1864, 6.0
        %v1877 = vmin.f32 %v1865, 6.0
        %v1878 = vmin.f32 %v1866, 6.0
        %v1879 = vmin.f32 %v1867, 6.0
        %v1880 = vmin.f32 %v1868, 6.0
        %v1881 = vmin.f32 %v1869, 6.0
        %v1882 = vmin.f32 %v1870, 6.0
        %v1883 = vmin.f32 %v1871, 6.0
        %v1884 = vmin.f32 %v1872, 6.0
        %v1885 = vmin.f32 %v1873, 6.0
        %v1886 = vmin.f32 %v1874, 6.0
        %v1887 = vmin.f32 %v1875, 6.0
        %v1888 = vld [vmem:[%s5] sm:$0xff]
        %v1889 = vld [vmem:[%s5 + $0x8] sm:$0xff]
        %v1890 = vld [vmem:[%s5 + $0x10] sm:$0xff]
        %v1891 = vld [vmem:[%s6] sm:$0x1]
        %v1892 = vld [vmem:[%s7] sm:$0xff]
        %v1893 = vld [vmem:[%s7 + $0x8] sm:$0xff]
        %v1894 = vld [vmem:[%s7 + $0x10] sm:$0xff]
        %v1895 = vld [vmem:[%s8] sm:$0xff]
        %v1896 = vld [vmem:[%s8 + $0x8] sm:$0xff]
        %v1897 = vld [vmem:[%s8 + $0x10] sm:$0xff]
        %v1898 = vld [vmem:[%s9] sm:$0xf]
        %v1899 = vld [vmem:[%s10] sm:$0xff]
        %v1900 = vadd.f32 %v1876, %v1877
        %1901 = vadd.xlane.f32.xlu0 %v1900
        %v1902 = vpop.xlane.xlu0 %1901
        %v1903 = vadd.f32 %v1880, %v1881
        %1904 = vadd.xlane.f32.xlu0 %v1903
        %v1905 = vpop.xlane.xlu0 %1904
        %v1906 = vadd.f32 %v1884, %v1885
        %1907 = vadd.xlane.f32.xlu0 %v1906
        %v1908 = vpop.xlane.xlu0 %1907
        %v1909 = vmul.f32 %v1902, 0.00390625
        %v1910 = vmul.f32 %v1905, 0.00390625
        %v1911 = vmul.f32 %v1908, 0.00390625
        %v1912 = vmul.f32 %v1888, %v1909
        %v1913 = vmul.f32 %v1889, %v1910
        %v1914 = vmul.f32 %v1890, %v1911
        %v1915 = vsel %vm896, %v1912, 0.0
        %v1916 = vsel %vm896, %v1913, 0.0
        %v1917 = vadd.f32 %v1915, %v1916
        %v1918 = vsel %vm896, %v1914, 0.0
        %v1919 = vadd.f32 %v1917, %v1918
        %v1920 = vrot.slane %v1919, 4
        %v1921 = vadd.f32 %v1919, %v1920
        %v1922 = vrot.slane %v1921, 2
        %v1923 = vadd.f32 %v1921, %v1922
        %v1924 = vrot.slane %v1923, 1
        %v1925 = vadd.f32 %v1923, %v1924
        %v1926 = vadd.f32 %v1925, %v1891
        %v1927 = vmax.f32 %v1926, 0.0
        %v1928 = vperm.slane %v1927, 0
        %v1929 = vmul.f32 %v1892, %v1928
        %v1930 = vmul.f32 %v1893, %v1928
        %v1931 = vmul.f32 %v1894, %v1928
        %v1932 = vsel %vm896, %v1929, 0.0
        %1933 = vadd.xlane.f32.xlu0 %v1932
        %v1934 = vpop.xlane.xlu0 %1933
        %v1935 = vsel %vm896, %v1930, 0.0
        %1936 = vadd.xlane.f32.xlu0 %v1935
        %v1937 = vpop.xlane.xlu0 %1936
        %v1938 = vsel %vm896, %v1931, 0.0
        %1939 = vadd.xlane.f32.xlu0 %v1938
        %v1940 = vpop.xlane.xlu0 %1939
        %v1941 = vadd.f32 %v1934, %v1895
        %v1942 = vadd.f32 %v1937, %v1896
        %v1943 = vadd.f32 %v1940, %v1897
        %v1944 = vadd.f32 %v1941, 3.0
        %v1945 = vadd.f32 %v1942, 3.0
        %v1946 = vadd.f32 %v1943, 3.0
        %v1947 = vmax.f32 %v1944, 0.0
        %v1948 = vmax.f32 %v1945, 0.0
        %v1949 = vmax.f32 %v1946, 0.0
        %v1950 = vmin.f32 %v1947, 6.0
        %v1951 = vmin.f32 %v1948, 6.0
        %v1952 = vmin.f32 %v1949, 6.0
        %v1953 = vmul.f32 %v1950, 0.16666667
        %v1954 = vmul.f32 %v1951, 0.16666667
        %v1955 = vmul.f32 %v1952, 0.16666667
        %1957 = vset.pattern.permute.xlu0 0
        %1958 = vperm.xlu0 %1957, %v1953
        %v1959 = vpop.permute.xlu0 %1958
        %1962 = vset.pattern.permute.xlu0 0
        %1963 = vperm.xlu0 %1962, %v1954
        %v1964 = vpop.permute.xlu0 %1963
        %1967 = vset.pattern.permute.xlu0 0
        %1968 = vperm.xlu0 %1967, %v1955
        %v1969 = vpop.permute.xlu0 %1968
        %v1971 = vmul.f32 %v1876, %v1959
        %v1972 = vmul.f32 %v1877, %v1959
        %v1973 = vmul.f32 %v1880, %v1964
        %v1974 = vmul.f32 %v1881, %v1964
        %v1975 = vmul.f32 %v1884, %v1969
        %v1976 = vmul.f32 %v1885, %v1969
        %v1977 = vpack.c.bf16 %v1973, %v1971
        %v1978 = vpack.c.bf16 %v1974, %v1972
        %v1979 = vpack.c.bf16 %v1975, %v1975
        %v1980 = vpack.c.bf16 %v1976, %v1976
        %1982 = vset.pattern.permute.xlu0 0
        %1983 = vperm.xlu0 %1982, %v1899
        %v1984 = vpop.permute.xlu0 %1983
        %vm1986 = vcmask 195584
        %v1988 = vsel %vm1986, %v1898, 0
        %vm1990 = vcmask 1043456
        %v1992 = vsel %vm1990, %v1979, 0
        %v1995 = vsel %vm1990, %v1980, 0
        %1997 = vmatpush.bf16.msra.mxu0 0
        %1998 = vmatpush.bf16.msra.mxu0 0
        %1999 = vmatpush.bf16.msra.mxu0 0
        %2000 = vmatpush.bf16.msra.mxu0 0
        %2001 = vmatpush.bf16.msra.mxu0 0
        %2002 = vmatpush.bf16.msra.mxu0 0
        %2003 = vmatpush.bf16.msra.mxu0 %v1992
        %2004 = vmatpush.bf16.msra.mxu0 %v1977
        %2005 = vmatmul.bf16.gmra.mxu0 %v1988
        %v2006 = vpop.f32.mrf.mxu0
        %v2007 = vadd.f32 %v1984, %v2006
        %v2008 = vpop.f32.mrf.mxu0
        %2009 = vdwg.mxu0
        %2010 = vmatpush.bf16.msra.mxu0 0
        %2011 = vmatpush.bf16.msra.mxu0 0
        %2012 = vmatpush.bf16.msra.mxu0 0
        %2013 = vmatpush.bf16.msra.mxu0 0
        %2014 = vmatpush.bf16.msra.mxu0 0
        %2015 = vmatpush.bf16.msra.mxu0 0
        %2016 = vmatpush.bf16.msra.mxu0 %v1995
        %2017 = vmatpush.bf16.msra.mxu0 %v1978
        %2018 = vmatmul.bf16.gmra.mxu0 %v1988
        %v2019 = vpop.f32.mrf.mxu0
        %v2020 = vadd.f32 %v1984, %v2019
        %v2021 = vpop.f32.mrf.mxu0
        %2022 = vdwg.mxu0
        %2023 = vst [vmem:[%s407] sm:$0xff] %v2007
        %2024 = vst [vmem:[%s407 + $0x8] sm:$0xff] %v2020
        %v2025 = vadd.f32 %v1878, %v1879
        %2026 = vadd.xlane.f32.xlu0 %v2025
        %v2027 = vpop.xlane.xlu0 %2026
        %v2028 = vadd.f32 %v1882, %v1883
        %2029 = vadd.xlane.f32.xlu0 %v2028
        %v2030 = vpop.xlane.xlu0 %2029
        %v2031 = vadd.f32 %v1886, %v1887
        %2032 = vadd.xlane.f32.xlu0 %v2031
        %v2033 = vpop.xlane.xlu0 %2032
        %v2034 = vmul.f32 %v2027, 0.00390625
        %v2035 = vmul.f32 %v2030, 0.00390625
        %v2036 = vmul.f32 %v2033, 0.00390625
        %v2037 = vmul.f32 %v1888, %v2034
        %v2038 = vmul.f32 %v1889, %v2035
        %v2039 = vmul.f32 %v1890, %v2036
        %v2040 = vsel %vm896, %v2037, 0.0
        %v2041 = vsel %vm896, %v2038, 0.0
        %v2042 = vadd.f32 %v2040, %v2041
        %v2043 = vsel %vm896, %v2039, 0.0
        %v2044 = vadd.f32 %v2042, %v2043
        %v2045 = vrot.slane %v2044, 4
        %v2046 = vadd.f32 %v2044, %v2045
        %v2047 = vrot.slane %v2046, 2
        %v2048 = vadd.f32 %v2046, %v2047
        %v2049 = vrot.slane %v2048, 1
        %v2050 = vadd.f32 %v2048, %v2049
        %v2051 = vadd.f32 %v2050, %v1891
        %v2052 = vmax.f32 %v2051, 0.0
        %v2053 = vperm.slane %v2052, 0
        %v2054 = vmul.f32 %v1892, %v2053
        %v2055 = vmul.f32 %v1893, %v2053
        %v2056 = vmul.f32 %v1894, %v2053
        %v2057 = vsel %vm896, %v2054, 0.0
        %2058 = vadd.xlane.f32.xlu0 %v2057
        %v2059 = vpop.xlane.xlu0 %2058
        %v2060 = vsel %vm896, %v2055, 0.0
        %2061 = vadd.xlane.f32.xlu0 %v2060
        %v2062 = vpop.xlane.xlu0 %2061
        %v2063 = vsel %vm896, %v2056, 0.0
        %2064 = vadd.xlane.f32.xlu0 %v2063
        %v2065 = vpop.xlane.xlu0 %2064
        %v2066 = vadd.f32 %v2059, %v1895
        %v2067 = vadd.f32 %v2062, %v1896
        %v2068 = vadd.f32 %v2065, %v1897
        %v2069 = vadd.f32 %v2066, 3.0
        %v2070 = vadd.f32 %v2067, 3.0
        %v2071 = vadd.f32 %v2068, 3.0
        %v2072 = vmax.f32 %v2069, 0.0
        %v2073 = vmax.f32 %v2070, 0.0
        %v2074 = vmax.f32 %v2071, 0.0
        %v2075 = vmin.f32 %v2072, 6.0
        %v2076 = vmin.f32 %v2073, 6.0
        %v2077 = vmin.f32 %v2074, 6.0
        %v2078 = vmul.f32 %v2075, 0.16666667
        %v2079 = vmul.f32 %v2076, 0.16666667
        %v2080 = vmul.f32 %v2077, 0.16666667
        %2082 = vset.pattern.permute.xlu0 0
        %2083 = vperm.xlu0 %2082, %v2078
        %v2084 = vpop.permute.xlu0 %2083
        %2087 = vset.pattern.permute.xlu0 0
        %2088 = vperm.xlu0 %2087, %v2079
        %v2089 = vpop.permute.xlu0 %2088
        %2092 = vset.pattern.permute.xlu0 0
        %2093 = vperm.xlu0 %2092, %v2080
        %v2094 = vpop.permute.xlu0 %2093
        %v2096 = vmul.f32 %v1878, %v2084
        %v2097 = vmul.f32 %v1879, %v2084
        %v2098 = vmul.f32 %v1882, %v2089
        %v2099 = vmul.f32 %v1883, %v2089
        %v2100 = vmul.f32 %v1886, %v2094
        %v2101 = vmul.f32 %v1887, %v2094
        %v2102 = vpack.c.bf16 %v2098, %v2096
        %v2103 = vpack.c.bf16 %v2099, %v2097
        %v2104 = vpack.c.bf16 %v2100, %v2100
        %v2105 = vpack.c.bf16 %v2101, %v2101
        %v2107 = vsel %vm1990, %v2104, 0
        %v2110 = vsel %vm1990, %v2105, 0
        %2112 = vmatpush.bf16.msra.mxu0 0
        %2113 = vmatpush.bf16.msra.mxu0 0
        %2114 = vmatpush.bf16.msra.mxu0 0
        %2115 = vmatpush.bf16.msra.mxu0 0
        %2116 = vmatpush.bf16.msra.mxu0 0
        %2117 = vmatpush.bf16.msra.mxu0 0
        %2118 = vmatpush.bf16.msra.mxu0 %v2107
        %2119 = vmatpush.bf16.msra.mxu0 %v2102
        %2120 = vmatmul.bf16.gmra.mxu0 %v1988
        %v2121 = vpop.f32.mrf.mxu0
        %v2122 = vadd.f32 %v1984, %v2121
        %v2123 = vpop.f32.mrf.mxu0
        %2124 = vdwg.mxu0
        %2125 = vmatpush.bf16.msra.mxu0 0
        %2126 = vmatpush.bf16.msra.mxu0 0
        %2127 = vmatpush.bf16.msra.mxu0 0
        %2128 = vmatpush.bf16.msra.mxu0 0
        %2129 = vmatpush.bf16.msra.mxu0 0
        %2130 = vmatpush.bf16.msra.mxu0 0
        %2131 = vmatpush.bf16.msra.mxu0 %v2110
        %2132 = vmatpush.bf16.msra.mxu0 %v2103
        %2133 = vmatmul.bf16.gmra.mxu0 %v1988
        %v2134 = vpop.f32.mrf.mxu0
        %v2135 = vadd.f32 %v1984, %v2134
        %v2136 = vpop.f32.mrf.mxu0
        %2137 = vdwg.mxu0
        %2138 = vst [vmem:[%s407 + $0x10] sm:$0xff] %v2122
        %2139 = vst [vmem:[%s407 + $0x18] sm:$0xff] %v2135
        %s2140 = sand.u32 %s291, 1
        %s2141 = scalar_lea.sflag [#allocation4], %s2140
        %s2142 = sand.u32 %s291, 1
        %s2143 = smul.addr %s2142, 32
        %s2144 = scalar_lea.vmem [#allocation3], %s2143
        // Predicated region
        $region69: #{tpu_custom_call.1} parent=67 // pred_check
          %p2145 = pneg %p301
        $region70: #{tpu_custom_call.1} parent=67 // pred_check_branch
          %2147 = sbr.rel (%p2145) target = $region72
        $region71: #{tpu_custom_call.1} parent=67 // pred_region
          %s2148 = smul.u32 4, %s26
          %2150 = vsyncadd %s2141, 0
          %s2151 = smul.addr %s2148, 8
          %s2152 = scalar_lea.hbm %s12, %s2151
          %s2154 = sshll.u32 %s2144, 4
          %s2155 = int_to_ptr.vmem [resolvable:$true] %s2154
          %s2156 = sshll.u32 %s2152, 4
          %s2157 = int_to_ptr.hbm [resolvable:$true] %s2156
          %2159 = dma.vmem_to_hbm [thread:$0]  %s2155, 512, %s2157, %s2141
        $region72: #{tpu_custom_call.1} parent=67 // pred_fallthru
          _
      $region68: #{tpu_custom_call.1} parent=5 // pred_fallthru
        _
      %p2160 = scmp.le.s32.totalorder 2, %s21
      // Predicated region
      $region73: #{tpu_custom_call.1} parent=5 // pred_check
        %p2161 = pneg %p2160
      $region74: #{tpu_custom_call.1} parent=5 // pred_check_branch
        %2163 = sbr.rel (%p2161) target = $region76
      $region75: #{tpu_custom_call.1} parent=5 // pred_region
        %s2164 = ssub.s32 %s21, 2
        // Predicated region
        $region77: #{tpu_custom_call.1} parent=75 // pred_check
          %p2165 = pneg %p307
        $region78: #{tpu_custom_call.1} parent=75 // pred_check_branch
          %2167 = sbr.rel (%p2165) target = $region80
        $region79: #{tpu_custom_call.1} parent=75 // pred_region
          %s2168 = sand.u32 %s292, 1
          %s2169 = scalar_lea.sflag [#allocation4], %s2168
          %s2170 = sand.u32 %s292, 1
          %s2171 = smul.addr %s2170, 32
          %s2172 = scalar_lea.vmem [#allocation3], %s2171
          %2174 = dma.done %s2169, 512
        $region80: #{tpu_custom_call.1} parent=75 // pred_fallthru
          _
      $region76: #{tpu_custom_call.1} parent=5 // pred_fallthru
        _
    $region6: #{tpu_custom_call.1} parent=1 // loop_footer
      %s25 = sadd.s32 1, %s21
    $region7: #{tpu_custom_call.1} parent=1 // loop_footer_branch
      %20 = sbr.rel target = $region3
    $region8: #{tpu_custom_call.1} parent=1 // loop_exit
      _
    %2175 = vsyncpa [#allocation4], 1
    %s2176 = scalar_lea.sflag [#allocation4], 1
    %2177 = vsyncpa %s2176, 1

</llo_original>
